<compile_context>
chip_gen: v6e
topology: v6e:2x2x1
jax: 0.10.0
libtpu: 0.0.40
codegen_flags: <defaults>
</compile_context>

<pallas_src>
import math
from functools import partial

import jax
import jax.numpy as jnp
from jax.experimental import pallas as pl
from jax.experimental.pallas import tpu as pltpu


# ----------------------------------------------------------------------------- helpers

def _round_up(n, m):
    return -(-n // m) * m


def _pad2(a, rows, cols):
    return jnp.pad(a, ((0, rows - a.shape[0]), (0, cols - a.shape[1])))


def _pad1(a, n):
    return jnp.pad(a, (0, n - a.shape[0]))


def _vmem_cap_bytes():
    """Physical VMEM capacity (per core), with a conservative fallback."""
    try:
        info = pltpu.get_tpu_info()
        cap = getattr(info, "vmem_capacity_bytes", None)
        if cap:
            return int(cap)
    except Exception:
        pass
    return 64 * 2 ** 20


# ----------------------------------------------------------------------------- kernel

def _gru_chunk_kernel(*refs, apply_proj):
    """One GRU layer, one (batch_block, time_chunk) grid step.

    refs (apply_proj=True):
      x_ref   (tc, bblk, Din)     input chunk (Din lane-padded)
      wih_ref (Din, 3H)           gate-stacked, pre-transposed input->hidden weights [r|z|n]
      whh_ref (H, 3H)             gate-stacked, pre-transposed hidden->hidden weights [r|z|n]
      bi_ref  (1, 3H)  f32        hoisted biases: [b_ir+b_hr | b_iz+b_hz | b_in]
      bhn_ref (1, H)   f32        b_hn (applied inside the recurrence)
      [wp_ref (H, Dout), bp_ref (1, Dout)]   fused output projection (last layer only)
      out_ref (tc, bblk, Dout)
      h_scr   (bblk, H) f32       hidden state carried across time chunks
      g_scr   (tc, bblk, 3H)      hoisted input-projection gates for this chunk
      [y_scr  (tc, bblk, H)]      chunk hidden outputs (projection layer only)
    """
    if apply_proj:
        (x_ref, wih_ref, whh_ref, bi_ref, bhn_ref, wp_ref, bp_ref,
         out_ref, h_scr, g_scr, y_scr) = refs
    else:
        (x_ref, wih_ref, whh_ref, bi_ref, bhn_ref,
         out_ref, h_scr, g_scr) = refs
        wp_ref = bp_ref = y_scr = None

    tc, bblk, din = x_ref.shape
    H = whh_ref.shape[0]                     # lane-padded hidden size
    wdt = whh_ref.dtype                      # weight / matmul-input dtype (bf16 or f32)

    c = pl.program_id(1)                     # time-chunk index (sequential recurrence)

    @pl.when(c == 0)
    def _():
        h_scr[...] = jnp.zeros_like(h_scr)

    # ---- Phase 1 (hoisted out of the recurrence): one fused 3H-wide input projection
    #      for the whole chunk.  (In-kernel reshape is a known minor relayout hazard when
    #      bblk is not a sublane multiple; acceptable at these sizes.)
    xf = x_ref[...].reshape(tc * bblk, din).astype(wdt)
    g = jnp.dot(xf, wih_ref[...], preferred_element_type=jnp.float32) + bi_ref[...]
    g_scr[...] = g.reshape(tc, bblk, 3 * H).astype(g_scr.dtype)

    b_hn = bhn_ref[...]                      # (1, H) f32

    # ---- Phase 2: serial recurrence; only ONE (bblk,H)x(H,3H) matmul per step remains.
    def step(t, h_prev):
        hw = h_prev.astype(wdt)
        ghh = jnp.dot(hw, whh_ref[...], preferred_element_type=jnp.float32)   # (bblk, 3H)
        g_t = g_scr[t].astype(jnp.float32)                                    # (bblk, 3H)
        rz = jax.nn.sigmoid(g_t[:, :2 * H] + ghh[:, :2 * H])                  # lane-aligned
        r = rz[:, :H]
        z = rz[:, H:]
        hn = ghh[:, 2 * H:] + b_hn
        n = jnp.tanh(g_t[:, 2 * H:] + r * hn)
        h_new = n + z * (h_prev - n)         # == (1-z)*n + z*h_prev, one fewer VPU op
        if apply_proj:
            y_scr[t] = h_new.astype(y_scr.dtype)
        else:
            out_ref[t] = h_new.astype(out_ref.dtype)   # direct store, no y_scr copy
        return h_new

    if tc <= 16:
        h_last = jax.lax.fori_loop(0, tc, step, h_scr[...], unroll=True)
    else:
        h_last = jax.lax.fori_loop(0, tc, step, h_scr[...], unroll=8)
    h_scr[...] = h_last

    # ---- Phase 3: fused nn.Linear on the last layer (bulk matmul over the chunk).
    if apply_proj:
        yf = y_scr[...].reshape(tc * bblk, H)
        y = jnp.dot(yf, wp_ref[...], preferred_element_type=jnp.float32) + bp_ref[...]
        out_ref[...] = y.reshape(tc, bblk, -1).astype(out_ref.dtype)


# ----------------------------------------------------------------------------- layer wrapper

def _run_gru_layer(x_tm, layer_p, proj=None, *, time_chunk, batch_blocks, out_dtype):
    """x_tm: (T, B, Din_padded) time-major. Returns (T, B, H_padded) or (T, B, Dout_padded)."""
    T, B, Dinp = x_tm.shape
    wih, whh, bi, bhn = layer_p
    Hp = whh.shape[0]
    G3 = whh.shape[1]
    assert G3 == 3 * Hp and wih.shape == (Dinp, G3)

    assert B % batch_blocks == 0, "batch must divide evenly into batch_blocks"
    bblk = B // batch_blocks
    assert bblk == B or bblk % 8 == 0, \
        "batch block must be the full batch or a multiple of 8 sublanes"

    tc = max(1, min(time_chunk, T))
    T_pad = _round_up(T, tc)
    if T_pad != T:
        # Zero-padded tail timesteps sit at the END of the final chunk: they pollute h_scr
        # only after the last real step, h_scr is re-zeroed at c==0 for the next batch
        # block, and out[:T] slices the padded rows away.  Do not reorder grid axes.
        x_tm = jnp.pad(x_tm, ((0, T_pad - T), (0, 0), (0, 0)))
    nc = T_pad // tc

    apply_proj = proj is not None
    if apply_proj:
        wp, bp = proj
        Doutp = wp.shape[-1]
    else:
        Doutp = Hp

    wdt = wih.dtype
    scr_dtype = jnp.bfloat16 if wdt == jnp.bfloat16 else jnp.float32

    in_arrays = [x_tm, wih, whh, bi, bhn]
    in_specs = [
        pl.BlockSpec((tc, bblk, Dinp), lambda b, c: (c, b, 0)),
        pl.BlockSpec((Dinp, G3), lambda b, c: (0, 0)),
        pl.BlockSpec((Hp, G3), lambda b, c: (0, 0)),
        pl.BlockSpec((1, G3), lambda b, c: (0, 0)),
        pl.BlockSpec((1, Hp), lambda b, c: (0, 0)),
    ]
    if apply_proj:
        in_arrays += [wp, bp]
        in_specs += [
            pl.BlockSpec((Hp, Doutp), lambda b, c: (0, 0)),
            pl.BlockSpec((1, Doutp), lambda b, c: (0, 0)),
        ]

    scratch = [
        pltpu.VMEM((bblk, Hp), jnp.float32),          # hidden state carry
        pltpu.VMEM((tc, bblk, G3), scr_dtype),        # hoisted input gates (bf16 on bf16 path)
    ]
    if apply_proj:
        scratch.append(pltpu.VMEM((tc, bblk, Hp), wdt))   # chunk hidden outputs for fused fc

    # VMEM budget estimate (double-buffered blocks + scratch), capped at the chip's capacity.
    xb = jnp.dtype(x_tm.dtype).itemsize
    ob = jnp.dtype(out_dtype).itemsize
    wb = jnp.dtype(wdt).itemsize
    sb = jnp.dtype(scr_dtype).itemsize
    est = 2 * tc * bblk * (Dinp * xb + Doutp * ob)            # pipelined in/out blocks
    est += 2 * ((Dinp + Hp) * G3 * wb + (G3 + Hp) * 4)        # weights/biases (double-buffered)
    if apply_proj:
        est += 2 * (Hp * Doutp * wb + Doutp * 4)
    est += bblk * Hp * 4 + tc * bblk * G3 * sb
    if apply_proj:
        est += tc * bblk * Hp * wb
    vmem_limit = int(min(_vmem_cap_bytes(), max(2 * est + (4 << 20), 32 << 20)))

    out = pl.pallas_call(
        partial(_gru_chunk_kernel, apply_proj=apply_proj),
        out_shape=jax.ShapeDtypeStruct((T_pad, B, Doutp), out_dtype),
        grid_spec=pltpu.PrefetchScalarGridSpec(
            num_scalar_prefetch=0,
            grid=(batch_blocks, nc),
            in_specs=in_specs,
            out_specs=pl.BlockSpec((tc, bblk, Doutp), lambda b, c: (c, b, 0)),
            scratch_shapes=scratch,
        ),
        compiler_params=pltpu.CompilerParams(
            dimension_semantics=("parallel", "arbitrary"),   # batch ||, time = recurrence
            vmem_limit_bytes=vmem_limit,
        ),
    )(*in_arrays)
    return out[:T]


# ----------------------------------------------------------------------------- parameter prep

def prepare_params(gru_params, fc_w, fc_b, weight_dtype=jnp.float32, lane=128):
    """One-time prep: split per gate, transpose, gate-stack along lanes ([r|z|n]),
    fold b_hr/b_hz, zero-pad every model dim to a 128-lane multiple, cast weights.
    Padded hidden units stay exactly 0 through the GRU (zero weight cols, zero biases, h0=0)."""
    prepared = []
    for li, (wih, whh, bih, bhh) in enumerate(gru_params):   # torch layout (3H,Din),(3H,H),(3H,)
        H = whh.shape[1]
        Din = wih.shape[1]
        Hp = _round_up(H, lane)
        Dinp = _round_up(Din, lane)
        wih3 = wih.reshape(3, H, Din)
        whh3 = whh.reshape(3, H, H)
        bih3 = bih.reshape(3, H)
        bhh3 = bhh.reshape(3, H)
        wih_f = jnp.concatenate(
            [_pad2(wih3[g].T, Dinp, Hp) for g in range(3)], axis=1).astype(weight_dtype)
        whh_f = jnp.concatenate(
            [_pad2(whh3[g].T, Hp, Hp) for g in range(3)], axis=1).astype(weight_dtype)
        bi = jnp.concatenate(
            [_pad1(bih3[0] + bhh3[0], Hp),          # r
             _pad1(bih3[1] + bhh3[1], Hp),          # z
             _pad1(bih3[2], Hp)]                    # n (b_hn stays separate)
        ).reshape(1, 3 * Hp).astype(jnp.float32)
        bhn = _pad1(bhh3[2], Hp).reshape(1, Hp).astype(jnp.float32)
        prepared.append((wih_f, whh_f, bi, bhn))

    Dout, Hfc = fc_w.shape
    Hp = _round_up(Hfc, lane)
    Doutp = _round_up(Dout, lane)
    wp = _pad2(fc_w.T, Hp, Doutp).astype(weight_dtype)
    bp = _pad1(fc_b, Doutp).reshape(1, Doutp).astype(jnp.float32)
    return prepared, (wp, bp), Dout


# ----------------------------------------------------------------------------- model

def reconstruction_model_forward(x, prepared, window_size, *,
                                 time_chunk=32, batch_blocks=1):
    """ReconstructionModel.forward: x (batch, in_dim) -> (batch, window_size, out_dim)."""
    gru_layers, proj, out_dim = prepared
    B, Din = x.shape
    # repeat_interleave(window_size, dim=1).view(B, window_size, -1)  (matches torch exactly)
    rep = jnp.repeat(x, window_size, axis=1).reshape(B, window_size, Din)
    h = jnp.transpose(rep, (1, 0, 2)).astype(jnp.float32)        # time-major (T, B, Din)

    Dinp = gru_layers[0][0].shape[0]
    if Dinp != Din:
        h = jnp.pad(h, ((0, 0), (0, 0), (0, Dinp - Din)))        # lane padding with zeros

    n_layers = len(gru_layers)
    for li, layer_p in enumerate(gru_layers):
        last = li == n_layers - 1
        # bf16 inter-layer activations on the bf16-weight path; final output always f32.
        out_dtype = jnp.float32 if last else layer_p[0].dtype
        h = _run_gru_layer(h, layer_p,
                           proj=proj if last else None,
                           time_chunk=time_chunk,
                           batch_blocks=batch_blocks,
                           out_dtype=out_dtype)
    out = jnp.transpose(h, (1, 0, 2))                            # (B, T, Dout_padded)
    return out[:, :, :out_dim]


# ----------------------------------------------------------------------------- init & reference

def init_gru_params(key, in_dim, hid_dim, n_layers):
    """nn.GRU-shaped params, uniform(-1/sqrt(H), 1/sqrt(H)), gate order [r, z, n]."""
    params = []
    k = 1.0 / math.sqrt(hid_dim)
    for layer in range(n_layers):
        d_in = in_dim if layer == 0 else hid_dim
        key, k1, k2, k3, k4 = jax.random.split(key, 5)
        wih = jax.random.uniform(k1, (3 * hid_dim, d_in), jnp.float32, -k, k)
        whh = jax.random.uniform(k2, (3 * hid_dim, hid_dim), jnp.float32, -k, k)
        bih = jax.random.uniform(k3, (3 * hid_dim,), jnp.float32, -k, k)
        bhh = jax.random.uniform(k4, (3 * hid_dim,), jnp.float32, -k, k)
        params.append((wih, whh, bih, bhh))
    return params


def _reference_model(x, gru_params, fc_w, fc_b, window_size):
    """Pure-JAX reference (lax.scan GRU + linear) in f32 for correctness checking."""
    B, Din = x.shape
    rep = jnp.repeat(x, window_size, axis=1).reshape(B, window_size, Din)
    h = jnp.transpose(rep, (1, 0, 2)).astype(jnp.float32)
    for (wih, whh, bih, bhh) in gru_params:
        H = whh.shape[1]

        def step(h_prev, x_t):
            gi = x_t @ wih.T + bih
            gh = h_prev @ whh.T + bhh
            i_r, i_z, i_n = gi[:, :H], gi[:, H:2 * H], gi[:, 2 * H:]
            h_r, h_z, h_n = gh[:, :H], gh[:, H:2 * H], gh[:, 2 * H:]
            r = jax.nn.sigmoid(i_r + h_r)
            z = jax.nn.sigmoid(i_z + h_z)
            n = jnp.tanh(i_n + r * h_n)
            h_new = (1.0 - z) * n + z * h_prev
            return h_new, h_new

        h0 = jnp.zeros((B, H), jnp.float32)
        _, h = jax.lax.scan(step, h0, h)
    dec = jnp.transpose(h, (1, 0, 2))
    return dec @ fc_w.T + fc_b


# ----------------------------------------------------------------------------- main

if __name__ == "__main__":
    window_size, in_dim, hid_dim, out_dim, n_layers = 8, 16, 32, 8, 2
    dropout = 0.2  # inference forward of nn.GRU applies no dropout

    key = jax.random.PRNGKey(0)
    k_x1, k_x2, k_p, k_fw, k_fb = jax.random.split(key, 5)

    gru_params = init_gru_params(k_p, in_dim, hid_dim, n_layers)
    kfc = 1.0 / math.sqrt(hid_dim)
    fc_w = jax.random.uniform(k_fw, (out_dim, hid_dim), jnp.float32, -kfc, kfc)
    fc_b = jax.random.uniform(k_fb, (out_dim,), jnp.float32, -kfc, kfc)

    prepared_f32 = prepare_params(gru_params, fc_w, fc_b, jnp.float32)

    # --- run 1: f32 weights, batch=2, whole sequence in one chunk; tight tolerance.
    batch = 2
    x = jax.random.normal(k_x1, (batch, in_dim), jnp.float32)
    out = reconstruction_model_forward(x, prepared_f32, window_size,
                                       time_chunk=32, batch_blocks=1)
    out = jax.block_until_ready(out)
    ref = _reference_model(x, gru_params, fc_w, fc_b, window_size)
    assert out.shape == (batch, window_size, out_dim)
    assert jnp.allclose(out, ref, atol=1e-4, rtol=1e-4), "f32 path mismatch"

    # --- run 2: f32 weights, larger batch, time_chunk=3 (chunking + tail padding),
    #            still checked at tight tolerance so chunking/bias-fold bugs can't hide.
    batch2 = 32
    x2 = jax.random.normal(k_x2, (batch2, in_dim), jnp.float32)
    out2 = reconstruction_model_forward(x2, prepared_f32, window_size,
                                        time_chunk=3, batch_blocks=1)
    out2 = jax.block_until_ready(out2)
    ref2 = _reference_model(x2, gru_params, fc_w, fc_b, window_size)
    assert out2.shape == (batch2, window_size, out_dim)
    assert jnp.allclose(out2, ref2, atol=1e-4, rtol=1e-4), "f32 chunked path mismatch"

    # --- run 3: bf16 weights + bf16 inter-layer activations on the same config;
    #            looser tolerance only accounts for bf16 rounding (logic checked above).
    prepared_bf16 = prepare_params(gru_params, fc_w, fc_b, jnp.bfloat16)
    out3 = reconstruction_model_forward(x2, prepared_bf16, window_size,
                                        time_chunk=3, batch_blocks=1)
    out3 = jax.block_until_ready(out3)
    assert out3.shape == (batch2, window_size, out_dim)
    assert jnp.allclose(out3, ref2, atol=1e-1, rtol=1e-1), "bf16 path mismatch"

    print("KERNEL_OK")
</pallas_src>

<mosaic_0001>
module attributes {stable_mosaic.version = 11 : i64} {
  func.func @_gru_chunk_kernel(%arg0: i32, %arg1: i32, %arg2: memref<8x2x128xf32, #tpu.memory_space<vmem>>, %arg3: memref<128x384xf32, #tpu.memory_space<vmem>>, %arg4: memref<128x384xf32, #tpu.memory_space<vmem>>, %arg5: memref<1x384xf32, #tpu.memory_space<vmem>>, %arg6: memref<1x128xf32, #tpu.memory_space<vmem>>, %arg7: memref<8x2x128xf32, #tpu.memory_space<vmem>>, %arg8: memref<2x128xf32, #tpu.memory_space<vmem>>, %arg9: memref<8x2x384xf32, #tpu.memory_space<vmem>>) attributes {dimension_semantics = [#tpu.dimension_semantics<parallel>, #tpu.dimension_semantics<arbitrary>], iteration_bounds = array<i64: 1, 1>, scalar_prefetch = 0 : i64, scratch_operands = 2 : i64, tpu.core_type = #tpu.core_type<tc>, window_params = [{transform_indices = @transform_0, window_bounds = array<i64: 8, 2, 128>}, {pipeline_mode = #tpu.pipeline_mode<synchronous>, transform_indices = @transform_1, window_bounds = array<i64: 128, 384>}, {pipeline_mode = #tpu.pipeline_mode<synchronous>, transform_indices = @transform_2, window_bounds = array<i64: 128, 384>}, {pipeline_mode = #tpu.pipeline_mode<synchronous>, transform_indices = @transform_3, window_bounds = array<i64: 1, 384>}, {pipeline_mode = #tpu.pipeline_mode<synchronous>, transform_indices = @transform_4, window_bounds = array<i64: 1, 128>}, {transform_indices = @transform_5, window_bounds = array<i64: 8, 2, 128>}]} {
    %c0_i32 = arith.constant 0 : i32
    %0 = arith.cmpi eq, %arg1, %c0_i32 : i32
    %1 = arith.extui %0 : i1 to i32
    %c0_i32_0 = arith.constant 0 : i32
    %2 = arith.cmpi ne, %1, %c0_i32_0 : i32
    scf.if %2 {
      %cst_81 = arith.constant 0.000000e+00 : f32
      %247 = vector.broadcast %cst_81 : f32 to vector<2x128xf32>
      %c0_82 = arith.constant 0 : index
      %c0_83 = arith.constant 0 : index
      %248 = vector.load %arg8[%c0_82, %c0_83] : memref<2x128xf32, #tpu.memory_space<vmem>>, vector<2x128xf32>
      tpu.vector_store %arg8[%c0_82, %c0_83], %247 {strides = array<i32>} : memref<2x128xf32, #tpu.memory_space<vmem>>, vector<2x128xf32>,
    } else {
    }
    %c0 = arith.constant 0 : index
    %c0_1 = arith.constant 0 : index
    %c0_2 = arith.constant 0 : index
    %3 = vector.load %arg2[%c0, %c0_1, %c0_2] : memref<8x2x128xf32, #tpu.memory_space<vmem>>, vector<8x2x128xf32>
    %4 = vector.shape_cast %3 : vector<8x2x128xf32> to vector<16x128xf32>
    %c0_3 = arith.constant 0 : index
    %c0_4 = arith.constant 0 : index
    %5 = vector.load %arg3[%c0_3, %c0_4] : memref<128x384xf32, #tpu.memory_space<vmem>>, vector<128x384xf32>
    %cst = arith.constant dense<0.000000e+00> : vector<16x384xf32>
    %6 = tpu.matmul %4, %5, %cst {dimension_numbers = #tpu.dot_dimension_numbers<[1], [0], [0], [1], [0, 0, 1, 1], [], []>} : vector<16x128xf32>, vector<128x384xf32>, vector<16x384xf32> -> vector<16x384xf32>
    %c0_5 = arith.constant 0 : index
    %c0_6 = arith.constant 0 : index
    %7 = vector.load %arg5[%c0_5, %c0_6] : memref<1x384xf32, #tpu.memory_space<vmem>>, vector<1x384xf32>
    %8 = vector.broadcast %7 : vector<1x384xf32> to vector<16x384xf32>
    %9 = arith.addf %6, %8 : vector<16x384xf32>
    %10 = vector.shape_cast %9 : vector<16x384xf32> to vector<8x2x384xf32>
    %c0_7 = arith.constant 0 : index
    %c0_8 = arith.constant 0 : index
    %c0_9 = arith.constant 0 : index
    %11 = vector.load %arg9[%c0_7, %c0_8, %c0_9] : memref<8x2x384xf32, #tpu.memory_space<vmem>>, vector<8x2x384xf32>
    tpu.vector_store %arg9[%c0_7, %c0_8, %c0_9], %10 {strides = array<i32>} : memref<8x2x384xf32, #tpu.memory_space<vmem>>, vector<8x2x384xf32>,
    %c0_10 = arith.constant 0 : index
    %c0_11 = arith.constant 0 : index
    %12 = vector.load %arg6[%c0_10, %c0_11] : memref<1x128xf32, #tpu.memory_space<vmem>>, vector<1x128xf32>
    %c0_12 = arith.constant 0 : index
    %c0_13 = arith.constant 0 : index
    %13 = vector.load %arg8[%c0_12, %c0_13] : memref<2x128xf32, #tpu.memory_space<vmem>>, vector<2x128xf32>
    %c0_i32_14 = arith.constant 0 : i32
    %c0_15 = arith.constant 0 : index
    %c0_16 = arith.constant 0 : index
    %14 = vector.load %arg4[%c0_15, %c0_16] : memref<128x384xf32, #tpu.memory_space<vmem>>, vector<128x384xf32>
    %cst_17 = arith.constant dense<0.000000e+00> : vector<2x384xf32>
    %15 = tpu.matmul %13, %14, %cst_17 {dimension_numbers = #tpu.dot_dimension_numbers<[1], [0], [0], [1], [0, 0, 1, 1], [], []>} : vector<2x128xf32>, vector<128x384xf32>, vector<2x384xf32> -> vector<2x384xf32>
    %16 = arith.index_cast %c0_i32_14 : i32 to index
    %c0_18 = arith.constant 0 : index
    %c0_19 = arith.constant 0 : index
    %17 = vector.load %arg9[%16, %c0_18, %c0_19] : memref<8x2x384xf32, #tpu.memory_space<vmem>>, vector<1x2x384xf32>
    %18 = vector.shape_cast %17 : vector<1x2x384xf32> to vector<2x384xf32>
    %19 = vector.extract_strided_slice %18 {offsets = [0, 0], sizes = [2, 256], strides = [1, 1]} : vector<2x384xf32> to vector<2x256xf32>
    %20 = vector.extract_strided_slice %15 {offsets = [0, 0], sizes = [2, 256], strides = [1, 1]} : vector<2x384xf32> to vector<2x256xf32>
    %21 = arith.addf %19, %20 : vector<2x256xf32>
    %22 = arith.negf %21 : vector<2x256xf32>
    %23 = math.exp %22 : vector<2x256xf32>
    %cst_20 = arith.constant 1.000000e+00 : f32
    %24 = vector.broadcast %cst_20 : f32 to vector<2x256xf32>
    %25 = arith.addf %24, %23 : vector<2x256xf32>
    %26 = arith.divf %24, %25 : vector<2x256xf32>
    %27 = vector.extract_strided_slice %26 {offsets = [0, 0], sizes = [2, 128], strides = [1, 1]} : vector<2x256xf32> to vector<2x128xf32>
    %28 = vector.extract_strided_slice %26 {offsets = [0, 128], sizes = [2, 128], strides = [1, 1]} : vector<2x256xf32> to vector<2x128xf32>
    %29 = vector.extract_strided_slice %15 {offsets = [0, 256], sizes = [2, 128], strides = [1, 1]} : vector<2x384xf32> to vector<2x128xf32>
    %30 = vector.broadcast %12 : vector<1x128xf32> to vector<2x128xf32>
    %31 = arith.addf %29, %30 : vector<2x128xf32>
    %32 = vector.extract_strided_slice %18 {offsets = [0, 256], sizes = [2, 128], strides = [1, 1]} : vector<2x384xf32> to vector<2x128xf32>
    %33 = arith.mulf %27, %31 : vector<2x128xf32>
    %34 = arith.addf %32, %33 : vector<2x128xf32>
    %35 = math.tanh %34 : vector<2x128xf32>
    %36 = arith.subf %13, %35 : vector<2x128xf32>
    %37 = arith.mulf %28, %36 : vector<2x128xf32>
    %38 = arith.addf %35, %37 : vector<2x128xf32>
    %39 = arith.index_cast %c0_i32_14 : i32 to index
    %c0_21 = arith.constant 0 : index
    %c0_22 = arith.constant 0 : index
    %40 = vector.load %arg7[%39, %c0_21, %c0_22] : memref<8x2x128xf32, #tpu.memory_space<vmem>>, vector<1x2x128xf32>
    %41 = vector.shape_cast %40 : vector<1x2x128xf32> to vector<2x128xf32>
    %42 = vector.shape_cast %38 : vector<2x128xf32> to vector<1x2x128xf32>
    tpu.vector_store %arg7[%39, %c0_21, %c0_22], %42 {strides = array<i32>} : memref<8x2x128xf32, #tpu.memory_space<vmem>>, vector<1x2x128xf32>,
    %c1_i32 = arith.constant 1 : i32
    %c0_23 = arith.constant 0 : index
    %c0_24 = arith.constant 0 : index
    %43 = vector.load %arg4[%c0_23, %c0_24] : memref<128x384xf32, #tpu.memory_space<vmem>>, vector<128x384xf32>
    %cst_25 = arith.constant dense<0.000000e+00> : vector<2x384xf32>
    %44 = tpu.matmul %38, %43, %cst_25 {dimension_numbers = #tpu.dot_dimension_numbers<[1], [0], [0], [1], [0, 0, 1, 1], [], []>} : vector<2x128xf32>, vector<128x384xf32>, vector<2x384xf32> -> vector<2x384xf32>
    %45 = arith.index_cast %c1_i32 : i32 to index
    %c0_26 = arith.constant 0 : index
    %c0_27 = arith.constant 0 : index
    %46 = vector.load %arg9[%45, %c0_26, %c0_27] : memref<8x2x384xf32, #tpu.memory_space<vmem>>, vector<1x2x384xf32>
    %47 = vector.shape_cast %46 : vector<1x2x384xf32> to vector<2x384xf32>
    %48 = vector.extract_strided_slice %47 {offsets = [0, 0], sizes = [2, 256], strides = [1, 1]} : vector<2x384xf32> to vector<2x256xf32>
    %49 = vector.extract_strided_slice %44 {offsets = [0, 0], sizes = [2, 256], strides = [1, 1]} : vector<2x384xf32> to vector<2x256xf32>
    %50 = arith.addf %48, %49 : vector<2x256xf32>
    %51 = arith.negf %50 : vector<2x256xf32>
    %52 = math.exp %51 : vector<2x256xf32>
    %cst_28 = arith.constant 1.000000e+00 : f32
    %53 = vector.broadcast %cst_28 : f32 to vector<2x256xf32>
    %54 = arith.addf %53, %52 : vector<2x256xf32>
    %55 = arith.divf %53, %54 : vector<2x256xf32>
    %56 = vector.extract_strided_slice %55 {offsets = [0, 0], sizes = [2, 128], strides = [1, 1]} : vector<2x256xf32> to vector<2x128xf32>
    %57 = vector.extract_strided_slice %55 {offsets = [0, 128], sizes = [2, 128], strides = [1, 1]} : vector<2x256xf32> to vector<2x128xf32>
    %58 = vector.extract_strided_slice %44 {offsets = [0, 256], sizes = [2, 128], strides = [1, 1]} : vector<2x384xf32> to vector<2x128xf32>
    %59 = vector.broadcast %12 : vector<1x128xf32> to vector<2x128xf32>
    %60 = arith.addf %58, %59 : vector<2x128xf32>
    %61 = vector.extract_strided_slice %47 {offsets = [0, 256], sizes = [2, 128], strides = [1, 1]} : vector<2x384xf32> to vector<2x128xf32>
    %62 = arith.mulf %56, %60 : vector<2x128xf32>
    %63 = arith.addf %61, %62 : vector<2x128xf32>
    %64 = math.tanh %63 : vector<2x128xf32>
    %65 = arith.subf %38, %64 : vector<2x128xf32>
    %66 = arith.mulf %57, %65 : vector<2x128xf32>
    %67 = arith.addf %64, %66 : vector<2x128xf32>
    %68 = arith.index_cast %c1_i32 : i32 to index
    %c0_29 = arith.constant 0 : index
    %c0_30 = arith.constant 0 : index
    %69 = vector.load %arg7[%68, %c0_29, %c0_30] : memref<8x2x128xf32, #tpu.memory_space<vmem>>, vector<1x2x128xf32>
    %70 = vector.shape_cast %69 : vector<1x2x128xf32> to vector<2x128xf32>
    %71 = vector.shape_cast %67 : vector<2x128xf32> to vector<1x2x128xf32>
    tpu.vector_store %arg7[%68, %c0_29, %c0_30], %71 {strides = array<i32>} : memref<8x2x128xf32, #tpu.memory_space<vmem>>, vector<1x2x128xf32>,
    %c2_i32 = arith.constant 2 : i32
    %c0_31 = arith.constant 0 : index
    %c0_32 = arith.constant 0 : index
    %72 = vector.load %arg4[%c0_31, %c0_32] : memref<128x384xf32, #tpu.memory_space<vmem>>, vector<128x384xf32>
    %cst_33 = arith.constant dense<0.000000e+00> : vector<2x384xf32>
    %73 = tpu.matmul %67, %72, %cst_33 {dimension_numbers = #tpu.dot_dimension_numbers<[1], [0], [0], [1], [0, 0, 1, 1], [], []>} : vector<2x128xf32>, vector<128x384xf32>, vector<2x384xf32> -> vector<2x384xf32>
    %74 = arith.index_cast %c2_i32 : i32 to index
    %c0_34 = arith.constant 0 : index
    %c0_35 = arith.constant 0 : index
    %75 = vector.load %arg9[%74, %c0_34, %c0_35] : memref<8x2x384xf32, #tpu.memory_space<vmem>>, vector<1x2x384xf32>
    %76 = vector.shape_cast %75 : vector<1x2x384xf32> to vector<2x384xf32>
    %77 = vector.extract_strided_slice %76 {offsets = [0, 0], sizes = [2, 256], strides = [1, 1]} : vector<2x384xf32> to vector<2x256xf32>
    %78 = vector.extract_strided_slice %73 {offsets = [0, 0], sizes = [2, 256], strides = [1, 1]} : vector<2x384xf32> to vector<2x256xf32>
    %79 = arith.addf %77, %78 : vector<2x256xf32>
    %80 = arith.negf %79 : vector<2x256xf32>
    %81 = math.exp %80 : vector<2x256xf32>
    %cst_36 = arith.constant 1.000000e+00 : f32
    %82 = vector.broadcast %cst_36 : f32 to vector<2x256xf32>
    %83 = arith.addf %82, %81 : vector<2x256xf32>
    %84 = arith.divf %82, %83 : vector<2x256xf32>
    %85 = vector.extract_strided_slice %84 {offsets = [0, 0], sizes = [2, 128], strides = [1, 1]} : vector<2x256xf32> to vector<2x128xf32>
    %86 = vector.extract_strided_slice %84 {offsets = [0, 128], sizes = [2, 128], strides = [1, 1]} : vector<2x256xf32> to vector<2x128xf32>
    %87 = vector.extract_strided_slice %73 {offsets = [0, 256], sizes = [2, 128], strides = [1, 1]} : vector<2x384xf32> to vector<2x128xf32>
    %88 = vector.broadcast %12 : vector<1x128xf32> to vector<2x128xf32>
    %89 = arith.addf %87, %88 : vector<2x128xf32>
    %90 = vector.extract_strided_slice %76 {offsets = [0, 256], sizes = [2, 128], strides = [1, 1]} : vector<2x384xf32> to vector<2x128xf32>
    %91 = arith.mulf %85, %89 : vector<2x128xf32>
    %92 = arith.addf %90, %91 : vector<2x128xf32>
    %93 = math.tanh %92 : vector<2x128xf32>
    %94 = arith.subf %67, %93 : vector<2x128xf32>
    %95 = arith.mulf %86, %94 : vector<2x128xf32>
    %96 = arith.addf %93, %95 : vector<2x128xf32>
    %97 = arith.index_cast %c2_i32 : i32 to index
    %c0_37 = arith.constant 0 : index
    %c0_38 = arith.constant 0 : index
    %98 = vector.load %arg7[%97, %c0_37, %c0_38] : memref<8x2x128xf32, #tpu.memory_space<vmem>>, vector<1x2x128xf32>
    %99 = vector.shape_cast %98 : vector<1x2x128xf32> to vector<2x128xf32>
    %100 = vector.shape_cast %96 : vector<2x128xf32> to vector<1x2x128xf32>
    tpu.vector_store %arg7[%97, %c0_37, %c0_38], %100 {strides = array<i32>} : memref<8x2x128xf32, #tpu.memory_space<vmem>>, vector<1x2x128xf32>,
    %c3_i32 = arith.constant 3 : i32
    %c0_39 = arith.constant 0 : index
    %c0_40 = arith.constant 0 : index
    %101 = vector.load %arg4[%c0_39, %c0_40] : memref<128x384xf32, #tpu.memory_space<vmem>>, vector<128x384xf32>
    %cst_41 = arith.constant dense<0.000000e+00> : vector<2x384xf32>
    %102 = tpu.matmul %96, %101, %cst_41 {dimension_numbers = #tpu.dot_dimension_numbers<[1], [0], [0], [1], [0, 0, 1, 1], [], []>} : vector<2x128xf32>, vector<128x384xf32>, vector<2x384xf32> -> vector<2x384xf32>
    %103 = arith.index_cast %c3_i32 : i32 to index
    %c0_42 = arith.constant 0 : index
    %c0_43 = arith.constant 0 : index
    %104 = vector.load %arg9[%103, %c0_42, %c0_43] : memref<8x2x384xf32, #tpu.memory_space<vmem>>, vector<1x2x384xf32>
    %105 = vector.shape_cast %104 : vector<1x2x384xf32> to vector<2x384xf32>
    %106 = vector.extract_strided_slice %105 {offsets = [0, 0], sizes = [2, 256], strides = [1, 1]} : vector<2x384xf32> to vector<2x256xf32>
    %107 = vector.extract_strided_slice %102 {offsets = [0, 0], sizes = [2, 256], strides = [1, 1]} : vector<2x384xf32> to vector<2x256xf32>
    %108 = arith.addf %106, %107 : vector<2x256xf32>
    %109 = arith.negf %108 : vector<2x256xf32>
    %110 = math.exp %109 : vector<2x256xf32>
    %cst_44 = arith.constant 1.000000e+00 : f32
    %111 = vector.broadcast %cst_44 : f32 to vector<2x256xf32>
    %112 = arith.addf %111, %110 : vector<2x256xf32>
    %113 = arith.divf %111, %112 : vector<2x256xf32>
    %114 = vector.extract_strided_slice %113 {offsets = [0, 0], sizes = [2, 128], strides = [1, 1]} : vector<2x256xf32> to vector<2x128xf32>
    %115 = vector.extract_strided_slice %113 {offsets = [0, 128], sizes = [2, 128], strides = [1, 1]} : vector<2x256xf32> to vector<2x128xf32>
    %116 = vector.extract_strided_slice %102 {offsets = [0, 256], sizes = [2, 128], strides = [1, 1]} : vector<2x384xf32> to vector<2x128xf32>
    %117 = vector.broadcast %12 : vector<1x128xf32> to vector<2x128xf32>
    %118 = arith.addf %116, %117 : vector<2x128xf32>
    %119 = vector.extract_strided_slice %105 {offsets = [0, 256], sizes = [2, 128], strides = [1, 1]} : vector<2x384xf32> to vector<2x128xf32>
    %120 = arith.mulf %114, %118 : vector<2x128xf32>
    %121 = arith.addf %119, %120 : vector<2x128xf32>
    %122 = math.tanh %121 : vector<2x128xf32>
    %123 = arith.subf %96, %122 : vector<2x128xf32>
    %124 = arith.mulf %115, %123 : vector<2x128xf32>
    %125 = arith.addf %122, %124 : vector<2x128xf32>
    %126 = arith.index_cast %c3_i32 : i32 to index
    %c0_45 = arith.constant 0 : index
    %c0_46 = arith.constant 0 : index
    %127 = vector.load %arg7[%126, %c0_45, %c0_46] : memref<8x2x128xf32, #tpu.memory_space<vmem>>, vector<1x2x128xf32>
    %128 = vector.shape_cast %127 : vector<1x2x128xf32> to vector<2x128xf32>
    %129 = vector.shape_cast %125 : vector<2x128xf32> to vector<1x2x128xf32>
    tpu.vector_store %arg7[%126, %c0_45, %c0_46], %129 {strides = array<i32>} : memref<8x2x128xf32, #tpu.memory_space<vmem>>, vector<1x2x128xf32>,
    %c4_i32 = arith.constant 4 : i32
    %c0_47 = arith.constant 0 : index
    %c0_48 = arith.constant 0 : index
    %130 = vector.load %arg4[%c0_47, %c0_48] : memref<128x384xf32, #tpu.memory_space<vmem>>, vector<128x384xf32>
    %cst_49 = arith.constant dense<0.000000e+00> : vector<2x384xf32>
    %131 = tpu.matmul %125, %130, %cst_49 {dimension_numbers = #tpu.dot_dimension_numbers<[1], [0], [0], [1], [0, 0, 1, 1], [], []>} : vector<2x128xf32>, vector<128x384xf32>, vector<2x384xf32> -> vector<2x384xf32>
    %132 = arith.index_cast %c4_i32 : i32 to index
    %c0_50 = arith.constant 0 : index
    %c0_51 = arith.constant 0 : index
    %133 = vector.load %arg9[%132, %c0_50, %c0_51] : memref<8x2x384xf32, #tpu.memory_space<vmem>>, vector<1x2x384xf32>
    %134 = vector.shape_cast %133 : vector<1x2x384xf32> to vector<2x384xf32>
    %135 = vector.extract_strided_slice %134 {offsets = [0, 0], sizes = [2, 256], strides = [1, 1]} : vector<2x384xf32> to vector<2x256xf32>
    %136 = vector.extract_strided_slice %131 {offsets = [0, 0], sizes = [2, 256], strides = [1, 1]} : vector<2x384xf32> to vector<2x256xf32>
    %137 = arith.addf %135, %136 : vector<2x256xf32>
    %138 = arith.negf %137 : vector<2x256xf32>
    %139 = math.exp %138 : vector<2x256xf32>
    %cst_52 = arith.constant 1.000000e+00 : f32
    %140 = vector.broadcast %cst_52 : f32 to vector<2x256xf32>
    %141 = arith.addf %140, %139 : vector<2x256xf32>
    %142 = arith.divf %140, %141 : vector<2x256xf32>
    %143 = vector.extract_strided_slice %142 {offsets = [0, 0], sizes = [2, 128], strides = [1, 1]} : vector<2x256xf32> to vector<2x128xf32>
    %144 = vector.extract_strided_slice %142 {offsets = [0, 128], sizes = [2, 128], strides = [1, 1]} : vector<2x256xf32> to vector<2x128xf32>
    %145 = vector.extract_strided_slice %131 {offsets = [0, 256], sizes = [2, 128], strides = [1, 1]} : vector<2x384xf32> to vector<2x128xf32>
    %146 = vector.broadcast %12 : vector<1x128xf32> to vector<2x128xf32>
    %147 = arith.addf %145, %146 : vector<2x128xf32>
    %148 = vector.extract_strided_slice %134 {offsets = [0, 256], sizes = [2, 128], strides = [1, 1]} : vector<2x384xf32> to vector<2x128xf32>
    %149 = arith.mulf %143, %147 : vector<2x128xf32>
    %150 = arith.addf %148, %149 : vector<2x128xf32>
    %151 = math.tanh %150 : vector<2x128xf32>
    %152 = arith.subf %125, %151 : vector<2x128xf32>
    %153 = arith.mulf %144, %152 : vector<2x128xf32>
    %154 = arith.addf %151, %153 : vector<2x128xf32>
    %155 = arith.index_cast %c4_i32 : i32 to index
    %c0_53 = arith.constant 0 : index
    %c0_54 = arith.constant 0 : index
    %156 = vector.load %arg7[%155, %c0_53, %c0_54] : memref<8x2x128xf32, #tpu.memory_space<vmem>>, vector<1x2x128xf32>
    %157 = vector.shape_cast %156 : vector<1x2x128xf32> to vector<2x128xf32>
    %158 = vector.shape_cast %154 : vector<2x128xf32> to vector<1x2x128xf32>
    tpu.vector_store %arg7[%155, %c0_53, %c0_54], %158 {strides = array<i32>} : memref<8x2x128xf32, #tpu.memory_space<vmem>>, vector<1x2x128xf32>,
    %c5_i32 = arith.constant 5 : i32
    %c0_55 = arith.constant 0 : index
    %c0_56 = arith.constant 0 : index
    %159 = vector.load %arg4[%c0_55, %c0_56] : memref<128x384xf32, #tpu.memory_space<vmem>>, vector<128x384xf32>
    %cst_57 = arith.constant dense<0.000000e+00> : vector<2x384xf32>
    %160 = tpu.matmul %154, %159, %cst_57 {dimension_numbers = #tpu.dot_dimension_numbers<[1], [0], [0], [1], [0, 0, 1, 1], [], []>} : vector<2x128xf32>, vector<128x384xf32>, vector<2x384xf32> -> vector<2x384xf32>
    %161 = arith.index_cast %c5_i32 : i32 to index
    %c0_58 = arith.constant 0 : index
    %c0_59 = arith.constant 0 : index
    %162 = vector.load %arg9[%161, %c0_58, %c0_59] : memref<8x2x384xf32, #tpu.memory_space<vmem>>, vector<1x2x384xf32>
    %163 = vector.shape_cast %162 : vector<1x2x384xf32> to vector<2x384xf32>
    %164 = vector.extract_strided_slice %163 {offsets = [0, 0], sizes = [2, 256], strides = [1, 1]} : vector<2x384xf32> to vector<2x256xf32>
    %165 = vector.extract_strided_slice %160 {offsets = [0, 0], sizes = [2, 256], strides = [1, 1]} : vector<2x384xf32> to vector<2x256xf32>
    %166 = arith.addf %164, %165 : vector<2x256xf32>
    %167 = arith.negf %166 : vector<2x256xf32>
    %168 = math.exp %167 : vector<2x256xf32>
    %cst_60 = arith.constant 1.000000e+00 : f32
    %169 = vector.broadcast %cst_60 : f32 to vector<2x256xf32>
    %170 = arith.addf %169, %168 : vector<2x256xf32>
    %171 = arith.divf %169, %170 : vector<2x256xf32>
    %172 = vector.extract_strided_slice %171 {offsets = [0, 0], sizes = [2, 128], strides = [1, 1]} : vector<2x256xf32> to vector<2x128xf32>
    %173 = vector.extract_strided_slice %171 {offsets = [0, 128], sizes = [2, 128], strides = [1, 1]} : vector<2x256xf32> to vector<2x128xf32>
    %174 = vector.extract_strided_slice %160 {offsets = [0, 256], sizes = [2, 128], strides = [1, 1]} : vector<2x384xf32> to vector<2x128xf32>
    %175 = vector.broadcast %12 : vector<1x128xf32> to vector<2x128xf32>
    %176 = arith.addf %174, %175 : vector<2x128xf32>
    %177 = vector.extract_strided_slice %163 {offsets = [0, 256], sizes = [2, 128], strides = [1, 1]} : vector<2x384xf32> to vector<2x128xf32>
    %178 = arith.mulf %172, %176 : vector<2x128xf32>
    %179 = arith.addf %177, %178 : vector<2x128xf32>
    %180 = math.tanh %179 : vector<2x128xf32>
    %181 = arith.subf %154, %180 : vector<2x128xf32>
    %182 = arith.mulf %173, %181 : vector<2x128xf32>
    %183 = arith.addf %180, %182 : vector<2x128xf32>
    %184 = arith.index_cast %c5_i32 : i32 to index
    %c0_61 = arith.constant 0 : index
    %c0_62 = arith.constant 0 : index
    %185 = vector.load %arg7[%184, %c0_61, %c0_62] : memref<8x2x128xf32, #tpu.memory_space<vmem>>, vector<1x2x128xf32>
    %186 = vector.shape_cast %185 : vector<1x2x128xf32> to vector<2x128xf32>
    %187 = vector.shape_cast %183 : vector<2x128xf32> to vector<1x2x128xf32>
    tpu.vector_store %arg7[%184, %c0_61, %c0_62], %187 {strides = array<i32>} : memref<8x2x128xf32, #tpu.memory_space<vmem>>, vector<1x2x128xf32>,
    %c6_i32 = arith.constant 6 : i32
    %c0_63 = arith.constant 0 : index
    %c0_64 = arith.constant 0 : index
    %188 = vector.load %arg4[%c0_63, %c0_64] : memref<128x384xf32, #tpu.memory_space<vmem>>, vector<128x384xf32>
    %cst_65 = arith.constant dense<0.000000e+00> : vector<2x384xf32>
    %189 = tpu.matmul %183, %188, %cst_65 {dimension_numbers = #tpu.dot_dimension_numbers<[1], [0], [0], [1], [0, 0, 1, 1], [], []>} : vector<2x128xf32>, vector<128x384xf32>, vector<2x384xf32> -> vector<2x384xf32>
    %190 = arith.index_cast %c6_i32 : i32 to index
    %c0_66 = arith.constant 0 : index
    %c0_67 = arith.constant 0 : index
    %191 = vector.load %arg9[%190, %c0_66, %c0_67] : memref<8x2x384xf32, #tpu.memory_space<vmem>>, vector<1x2x384xf32>
    %192 = vector.shape_cast %191 : vector<1x2x384xf32> to vector<2x384xf32>
    %193 = vector.extract_strided_slice %192 {offsets = [0, 0], sizes = [2, 256], strides = [1, 1]} : vector<2x384xf32> to vector<2x256xf32>
    %194 = vector.extract_strided_slice %189 {offsets = [0, 0], sizes = [2, 256], strides = [1, 1]} : vector<2x384xf32> to vector<2x256xf32>
    %195 = arith.addf %193, %194 : vector<2x256xf32>
    %196 = arith.negf %195 : vector<2x256xf32>
    %197 = math.exp %196 : vector<2x256xf32>
    %cst_68 = arith.constant 1.000000e+00 : f32
    %198 = vector.broadcast %cst_68 : f32 to vector<2x256xf32>
    %199 = arith.addf %198, %197 : vector<2x256xf32>
    %200 = arith.divf %198, %199 : vector<2x256xf32>
    %201 = vector.extract_strided_slice %200 {offsets = [0, 0], sizes = [2, 128], strides = [1, 1]} : vector<2x256xf32> to vector<2x128xf32>
    %202 = vector.extract_strided_slice %200 {offsets = [0, 128], sizes = [2, 128], strides = [1, 1]} : vector<2x256xf32> to vector<2x128xf32>
    %203 = vector.extract_strided_slice %189 {offsets = [0, 256], sizes = [2, 128], strides = [1, 1]} : vector<2x384xf32> to vector<2x128xf32>
    %204 = vector.broadcast %12 : vector<1x128xf32> to vector<2x128xf32>
    %205 = arith.addf %203, %204 : vector<2x128xf32>
    %206 = vector.extract_strided_slice %192 {offsets = [0, 256], sizes = [2, 128], strides = [1, 1]} : vector<2x384xf32> to vector<2x128xf32>
    %207 = arith.mulf %201, %205 : vector<2x128xf32>
    %208 = arith.addf %206, %207 : vector<2x128xf32>
    %209 = math.tanh %208 : vector<2x128xf32>
    %210 = arith.subf %183, %209 : vector<2x128xf32>
    %211 = arith.mulf %202, %210 : vector<2x128xf32>
    %212 = arith.addf %209, %211 : vector<2x128xf32>
    %213 = arith.index_cast %c6_i32 : i32 to index
    %c0_69 = arith.constant 0 : index
    %c0_70 = arith.constant 0 : index
    %214 = vector.load %arg7[%213, %c0_69, %c0_70] : memref<8x2x128xf32, #tpu.memory_space<vmem>>, vector<1x2x128xf32>
    %215 = vector.shape_cast %214 : vector<1x2x128xf32> to vector<2x128xf32>
    %216 = vector.shape_cast %212 : vector<2x128xf32> to vector<1x2x128xf32>
    tpu.vector_store %arg7[%213, %c0_69, %c0_70], %216 {strides = array<i32>} : memref<8x2x128xf32, #tpu.memory_space<vmem>>, vector<1x2x128xf32>,
    %c7_i32 = arith.constant 7 : i32
    %c0_71 = arith.constant 0 : index
    %c0_72 = arith.constant 0 : index
    %217 = vector.load %arg4[%c0_71, %c0_72] : memref<128x384xf32, #tpu.memory_space<vmem>>, vector<128x384xf32>
    %cst_73 = arith.constant dense<0.000000e+00> : vector<2x384xf32>
    %218 = tpu.matmul %212, %217, %cst_73 {dimension_numbers = #tpu.dot_dimension_numbers<[1], [0], [0], [1], [0, 0, 1, 1], [], []>} : vector<2x128xf32>, vector<128x384xf32>, vector<2x384xf32> -> vector<2x384xf32>
    %219 = arith.index_cast %c7_i32 : i32 to index
    %c0_74 = arith.constant 0 : index
    %c0_75 = arith.constant 0 : index
    %220 = vector.load %arg9[%219, %c0_74, %c0_75] : memref<8x2x384xf32, #tpu.memory_space<vmem>>, vector<1x2x384xf32>
    %221 = vector.shape_cast %220 : vector<1x2x384xf32> to vector<2x384xf32>
    %222 = vector.extract_strided_slice %221 {offsets = [0, 0], sizes = [2, 256], strides = [1, 1]} : vector<2x384xf32> to vector<2x256xf32>
    %223 = vector.extract_strided_slice %218 {offsets = [0, 0], sizes = [2, 256], strides = [1, 1]} : vector<2x384xf32> to vector<2x256xf32>
    %224 = arith.addf %222, %223 : vector<2x256xf32>
    %225 = arith.negf %224 : vector<2x256xf32>
    %226 = math.exp %225 : vector<2x256xf32>
    %cst_76 = arith.constant 1.000000e+00 : f32
    %227 = vector.broadcast %cst_76 : f32 to vector<2x256xf32>
    %228 = arith.addf %227, %226 : vector<2x256xf32>
    %229 = arith.divf %227, %228 : vector<2x256xf32>
    %230 = vector.extract_strided_slice %229 {offsets = [0, 0], sizes = [2, 128], strides = [1, 1]} : vector<2x256xf32> to vector<2x128xf32>
    %231 = vector.extract_strided_slice %229 {offsets = [0, 128], sizes = [2, 128], strides = [1, 1]} : vector<2x256xf32> to vector<2x128xf32>
    %232 = vector.extract_strided_slice %218 {offsets = [0, 256], sizes = [2, 128], strides = [1, 1]} : vector<2x384xf32> to vector<2x128xf32>
    %233 = vector.broadcast %12 : vector<1x128xf32> to vector<2x128xf32>
    %234 = arith.addf %232, %233 : vector<2x128xf32>
    %235 = vector.extract_strided_slice %221 {offsets = [0, 256], sizes = [2, 128], strides = [1, 1]} : vector<2x384xf32> to vector<2x128xf32>
    %236 = arith.mulf %230, %234 : vector<2x128xf32>
    %237 = arith.addf %235, %236 : vector<2x128xf32>
    %238 = math.tanh %237 : vector<2x128xf32>
    %239 = arith.subf %212, %238 : vector<2x128xf32>
    %240 = arith.mulf %231, %239 : vector<2x128xf32>
    %241 = arith.addf %238, %240 : vector<2x128xf32>
    %242 = arith.index_cast %c7_i32 : i32 to index
    %c0_77 = arith.constant 0 : index
    %c0_78 = arith.constant 0 : index
    %243 = vector.load %arg7[%242, %c0_77, %c0_78] : memref<8x2x128xf32, #tpu.memory_space<vmem>>, vector<1x2x128xf32>
    %244 = vector.shape_cast %243 : vector<1x2x128xf32> to vector<2x128xf32>
    %245 = vector.shape_cast %241 : vector<2x128xf32> to vector<1x2x128xf32>
    tpu.vector_store %arg7[%242, %c0_77, %c0_78], %245 {strides = array<i32>} : memref<8x2x128xf32, #tpu.memory_space<vmem>>, vector<1x2x128xf32>,
    %c8_i32 = arith.constant 8 : i32
    %c0_79 = arith.constant 0 : index
    %c0_80 = arith.constant 0 : index
    %246 = vector.load %arg8[%c0_79, %c0_80] : memref<2x128xf32, #tpu.memory_space<vmem>>, vector<2x128xf32>
    tpu.vector_store %arg8[%c0_79, %c0_80], %241 {strides = array<i32>} : memref<2x128xf32, #tpu.memory_space<vmem>>, vector<2x128xf32>,
    return
  }
  func.func @transform_0(%arg0: i32, %arg1: i32) -> (i32, i32, i32) {
    %c0_i32 = arith.constant 0 : i32
    %c0_i32_0 = arith.constant 0 : i32
    return %arg1, %arg0, %c0_i32 : i32, i32, i32
  }
  func.func @transform_1(%arg0: i32, %arg1: i32) -> (i32, i32) {
    %c0_i32 = arith.constant 0 : i32
    %c0_i32_0 = arith.constant 0 : i32
    %c0_i32_1 = arith.constant 0 : i32
    return %c0_i32, %c0_i32_0 : i32, i32
  }
  func.func @transform_2(%arg0: i32, %arg1: i32) -> (i32, i32) {
    %c0_i32 = arith.constant 0 : i32
    %c0_i32_0 = arith.constant 0 : i32
    %c0_i32_1 = arith.constant 0 : i32
    return %c0_i32, %c0_i32_0 : i32, i32
  }
  func.func @transform_3(%arg0: i32, %arg1: i32) -> (i32, i32) {
    %c0_i32 = arith.constant 0 : i32
    %c0_i32_0 = arith.constant 0 : i32
    %c0_i32_1 = arith.constant 0 : i32
    return %c0_i32, %c0_i32_0 : i32, i32
  }
  func.func @transform_4(%arg0: i32, %arg1: i32) -> (i32, i32) {
    %c0_i32 = arith.constant 0 : i32
    %c0_i32_0 = arith.constant 0 : i32
    %c0_i32_1 = arith.constant 0 : i32
    return %c0_i32, %c0_i32_0 : i32, i32
  }
  func.func @transform_5(%arg0: i32, %arg1: i32) -> (i32, i32, i32) {
    %c0_i32 = arith.constant 0 : i32
    %c0_i32_0 = arith.constant 0 : i32
    return %arg1, %arg0, %c0_i32 : i32, i32, i32
  }
}

</mosaic_0001>

<llo_original>
// kernel: tpu_custom_call.1
$region0: #{tpu_custom_call.1}
  #allocation0 [shape = 'u32[]', space=smem, size = 0x4, offset = 0x4, fixed_abs, tag = 'smem constant byte address 0x4 - core index']
  #allocation1 [shape = 'u32[144,128]{1,0:T(1,128)}', space=vmem, size = 0x12000, scoped, tag = 'internal scratch']
  #allocation2 [shape = 'f32[2,128]{1,0:T(2,128)}', space=vmem, size = 0x400, scoped, tag = 'scratch operand']
  #allocation3 [shape = 'f32[8,2,384]{2,1,0:T(2,128)}', space=vmem, size = 0x6000, scoped, tag = 'scratch operand']
  %s0 = inlined_call_operand.hbm [shape: f32[8,2,128], index: 0, kind: input, shape index: {}]
  %s1 = inlined_call_operand.hbm [shape: f32[128,384], index: 1, kind: input, shape index: {}]
  %s2 = inlined_call_operand.hbm [shape: f32[128,384], index: 2, kind: input, shape index: {}]
  %s3 = inlined_call_operand.vmem [shape: f32[1,384], index: 3, kind: input, shape index: {}]
  %s4 = inlined_call_operand.vmem [shape: f32[1,128], index: 4, kind: input, shape index: {}]
  %s5 = inlined_call_operand.hbm [shape: f32[8,2,128], index: 5, kind: output, shape index: {}]
  %s6 = sld [smem:[#allocation0]]
  $region46: #{tpu_custom_call.1} parent=0
    _
  %s8 = ssub.s32 1, %s6
  %s9 = scalar_select 0, %s8, %s6
  $region1: #{tpu_custom_call.1} parent=0
    #allocation4 [shape = 'u8[8192]{0}', space=vmem, size = 0x2000, scoped, tag = 'input window, operand 0, single buffered']
    #allocation5 [shape = 's32[1]{0}', space=sflag, size = 0x4, scoped, tag = 'scoped memory for tpu_custom_call.1']
    #allocation6 [shape = 's32[1]{0}', space=sflag, size = 0x4, scoped, tag = 'scoped memory for tpu_custom_call.1']
    #allocation7 [shape = 'u8[196608]{0}', space=vmem, size = 0x30000, scoped, tag = 'input window, operand 1, single buffered']
    #allocation8 [shape = 's32[1]{0}', space=sflag, size = 0x4, scoped, tag = 'scoped memory for tpu_custom_call.1']
    #allocation9 [shape = 'u8[196608]{0}', space=vmem, size = 0x30000, scoped, tag = 'input window, operand 2, single buffered']
    #allocation10 [shape = 'u8[8192]{0}', space=vmem, size = 0x2000, scoped, tag = 'output window, operand 0, single buffered']
    %10 = vsyncpa [#allocation5], 0
    %11 = vsyncpa [#allocation8], 0
    %12 = vsyncpa [#allocation6], 0
    // Predicated region
    $region2: #{tpu_custom_call.1} parent=1 // pred_check
      _
    $region3: #{tpu_custom_call.1} parent=1 // pred_check_branch
      %14 = sbr.rel (0) target = $region5
    $region4: #{tpu_custom_call.1} parent=1 // pred_region
      %s16 = ssub.s32 256, 256
      %17 = vsyncadd [#allocation5], %s16
      %s18 = sshll.u32 [#allocation4], 4
      %s19 = int_to_ptr.vmem [resolvable:$true] %s18
      %24 = dma.hbm_to_vmem [thread:$0]  %s0, 256, %s19, [#allocation5], 32, 32, 2
    $region5: #{tpu_custom_call.1} parent=1 // pred_fallthru
      _
    // Predicated region
    $region6: #{tpu_custom_call.1} parent=1 // pred_check
      _
    $region7: #{tpu_custom_call.1} parent=1 // pred_check_branch
      %26 = sbr.rel (0) target = $region9
    $region8: #{tpu_custom_call.1} parent=1 // pred_region
      %s28 = ssub.s32 6144, 6144
      %29 = vsyncadd [#allocation8], %s28
      %s30 = sshll.u32 [#allocation7], 4
      %s31 = int_to_ptr.vmem [resolvable:$true] %s30
      %36 = dma.hbm_to_vmem [thread:$0]  %s1, 6144, %s31, [#allocation8], 384, 384, 24
    $region9: #{tpu_custom_call.1} parent=1 // pred_fallthru
      _
    // Predicated region
    $region10: #{tpu_custom_call.1} parent=1 // pred_check
      _
    $region11: #{tpu_custom_call.1} parent=1 // pred_check_branch
      %38 = sbr.rel (0) target = $region13
    $region12: #{tpu_custom_call.1} parent=1 // pred_region
      %s40 = ssub.s32 6144, 6144
      %41 = vsyncadd [#allocation8], %s40
      %s42 = sshll.u32 [#allocation9], 4
      %s43 = int_to_ptr.vmem [resolvable:$true] %s42
      %48 = dma.hbm_to_vmem [thread:$0]  %s2, 6144, %s43, [#allocation8], 384, 384, 24
    $region13: #{tpu_custom_call.1} parent=1 // pred_fallthru
      _
    // Predicated region
    $region14: #{tpu_custom_call.1} parent=1 // pred_check
      _
    $region15: #{tpu_custom_call.1} parent=1 // pred_check_branch
      %50 = sbr.rel (0) target = $region17
    $region16: #{tpu_custom_call.1} parent=1 // pred_region
      _
    $region17: #{tpu_custom_call.1} parent=1 // pred_fallthru
      _
    // Predicated region
    $region18: #{tpu_custom_call.1} parent=1 // pred_check
      _
    $region19: #{tpu_custom_call.1} parent=1 // pred_check_branch
      %52 = sbr.rel (0) target = $region21
    $region20: #{tpu_custom_call.1} parent=1 // pred_region
      _
    $region21: #{tpu_custom_call.1} parent=1 // pred_fallthru
      _
    // Predicated region
    $region22: #{tpu_custom_call.1} parent=1 // pred_check
      _
    $region23: #{tpu_custom_call.1} parent=1 // pred_check_branch
      %54 = sbr.rel (0) target = $region25
    $region24: #{tpu_custom_call.1} parent=1 // pred_region
      %55 = dma.done [#allocation5], 256
    $region25: #{tpu_custom_call.1} parent=1 // pred_fallthru
      _
    // Predicated region
    $region26: #{tpu_custom_call.1} parent=1 // pred_check
      _
    $region27: #{tpu_custom_call.1} parent=1 // pred_check_branch
      %57 = sbr.rel (0) target = $region29
    $region28: #{tpu_custom_call.1} parent=1 // pred_region
      %58 = dma.done [#allocation8], 6144
    $region29: #{tpu_custom_call.1} parent=1 // pred_fallthru
      _
    // Predicated region
    $region30: #{tpu_custom_call.1} parent=1 // pred_check
      _
    $region31: #{tpu_custom_call.1} parent=1 // pred_check_branch
      %60 = sbr.rel (0) target = $region33
    $region32: #{tpu_custom_call.1} parent=1 // pred_region
      %61 = dma.done [#allocation8], 6144
    $region33: #{tpu_custom_call.1} parent=1 // pred_fallthru
      _
    %p62 = scmp.eq.s32.totalorder 0, 0
    // Predicated region
    $region34: #{tpu_custom_call.1} parent=1 // pred_check
      %p63 = pneg %p62
    $region35: #{tpu_custom_call.1} parent=1 // pred_check_branch
      %65 = sbr.rel (%p63) target = $region37
    $region36: #{tpu_custom_call.1} parent=1 // pred_region
      %66 = vst [vmem:[#allocation2] sm:$0x3] 0.0
    $region37: #{tpu_custom_call.1} parent=1 // pred_fallthru
      _
    %v67 = vld [vmem:[#allocation4] sm:$0x3]
    %v68 = vld [vmem:[#allocation4 + $0x2] sm:$0x3]
    %v69 = vld [vmem:[#allocation4 + $0x4] sm:$0x3]
    %v70 = vld [vmem:[#allocation4 + $0x6] sm:$0x3]
    %v71 = vld [vmem:[#allocation4 + $0x8] sm:$0x3]
    %v72 = vld [vmem:[#allocation4 + $0xa] sm:$0x3]
    %v73 = vld [vmem:[#allocation4 + $0xc] sm:$0x3]
    %v74 = vld [vmem:[#allocation4 + $0xe] sm:$0x3]
    %v75 = vld [vmem:[#allocation7] sm:$0xff]
    %v76 = vld [vmem:[#allocation7 + $0x8] sm:$0xff]
    %v77 = vld [vmem:[#allocation7 + $0x10] sm:$0xff]
    %v78 = vld [vmem:[#allocation7 + $0x18] sm:$0xff]
    %v79 = vld [vmem:[#allocation7 + $0x20] sm:$0xff]
    %v80 = vld [vmem:[#allocation7 + $0x28] sm:$0xff]
    %v81 = vld [vmem:[#allocation7 + $0x30] sm:$0xff]
    %v82 = vld [vmem:[#allocation7 + $0x38] sm:$0xff]
    %v83 = vld [vmem:[#allocation7 + $0x40] sm:$0xff]
    %v84 = vld [vmem:[#allocation7 + $0x48] sm:$0xff]
    %v85 = vld [vmem:[#allocation7 + $0x50] sm:$0xff]
    %v86 = vld [vmem:[#allocation7 + $0x58] sm:$0xff]
    %v87 = vld [vmem:[#allocation7 + $0x60] sm:$0xff]
    %v88 = vld [vmem:[#allocation7 + $0x68] sm:$0xff]
    %v89 = vld [vmem:[#allocation7 + $0x70] sm:$0xff]
    %v90 = vld [vmem:[#allocation7 + $0x78] sm:$0xff]
    %v91 = vld [vmem:[#allocation7 + $0x80] sm:$0xff]
    %v92 = vld [vmem:[#allocation7 + $0x88] sm:$0xff]
    %v93 = vld [vmem:[#allocation7 + $0x90] sm:$0xff]
    %v94 = vld [vmem:[#allocation7 + $0x98] sm:$0xff]
    %v95 = vld [vmem:[#allocation7 + $0xa0] sm:$0xff]
    %v96 = vld [vmem:[#allocation7 + $0xa8] sm:$0xff]
    %v97 = vld [vmem:[#allocation7 + $0xb0] sm:$0xff]
    %v98 = vld [vmem:[#allocation7 + $0xb8] sm:$0xff]
    %v99 = vld [vmem:[#allocation7 + $0xc0] sm:$0xff]
    %v100 = vld [vmem:[#allocation7 + $0xc8] sm:$0xff]
    %v101 = vld [vmem:[#allocation7 + $0xd0] sm:$0xff]
    %v102 = vld [vmem:[#allocation7 + $0xd8] sm:$0xff]
    %v103 = vld [vmem:[#allocation7 + $0xe0] sm:$0xff]
    %v104 = vld [vmem:[#allocation7 + $0xe8] sm:$0xff]
    %v105 = vld [vmem:[#allocation7 + $0xf0] sm:$0xff]
    %v106 = vld [vmem:[#allocation7 + $0xf8] sm:$0xff]
    %v107 = vld [vmem:[#allocation7 + $0x100] sm:$0xff]
    %v108 = vld [vmem:[#allocation7 + $0x108] sm:$0xff]
    %v109 = vld [vmem:[#allocation7 + $0x110] sm:$0xff]
    %v110 = vld [vmem:[#allocation7 + $0x118] sm:$0xff]
    %v111 = vld [vmem:[#allocation7 + $0x120] sm:$0xff]
    %v112 = vld [vmem:[#allocation7 + $0x128] sm:$0xff]
    %v113 = vld [vmem:[#allocation7 + $0x130] sm:$0xff]
    %v114 = vld [vmem:[#allocation7 + $0x138] sm:$0xff]
    %v115 = vld [vmem:[#allocation7 + $0x140] sm:$0xff]
    %v116 = vld [vmem:[#allocation7 + $0x148] sm:$0xff]
    %v117 = vld [vmem:[#allocation7 + $0x150] sm:$0xff]
    %v118 = vld [vmem:[#allocation7 + $0x158] sm:$0xff]
    %v119 = vld [vmem:[#allocation7 + $0x160] sm:$0xff]
    %v120 = vld [vmem:[#allocation7 + $0x168] sm:$0xff]
    %v121 = vld [vmem:[#allocation7 + $0x170] sm:$0xff]
    %v122 = vld [vmem:[#allocation7 + $0x178] sm:$0xff]
    %v123 = vld [vmem:[%s3] sm:$0x7]
    %v125 = vlaneseq
    %v126 = vshrl.u32 %v125, 7
    %v127 = vsub.s32 0, %v126
    %v128 = vrot.slane %v123, %v127
    %v129 = vlaneseq
    %v130 = vshrl.u32 %v129, 7
    %v131 = vsub.s32 1, %v130
    %v132 = vrot.slane %v123, %v131
    %v133 = vlaneseq
    %v134 = vshrl.u32 %v133, 7
    %v135 = vsub.s32 2, %v134
    %v136 = vrot.slane %v123, %v135
    %v148 = vcombine.low %v67, %v68
    %v149 = vcombine.low %v69, %v70
    %v151 = vunpack.c.l.s4 1983009808
    %v152 = vunpack.c.0.s8 %v151
    %v153 = vlaneseq
    %v154 = vshrl.u32 %v153, 7
    %v155 = vsub.s32 %v152, %v154
    %v156 = vrot.slane %v148, %v155
    %v158 = vunpack.c.l.s4 1983009808
    %v159 = vunpack.c.0.s8 %v158
    %v160 = vlaneseq
    %v161 = vshrl.u32 %v160, 7
    %v162 = vsub.s32 %v159, %v161
    %v163 = vrot.slane %v149, %v162
    %v164 = vcombine.low %v156, %v163
    %v165 = vcombine.low %v71, %v72
    %v166 = vcombine.low %v73, %v74
    %v168 = vunpack.c.l.s4 1983009808
    %v169 = vunpack.c.0.s8 %v168
    %v170 = vlaneseq
    %v171 = vshrl.u32 %v170, 7
    %v172 = vsub.s32 %v169, %v171
    %v173 = vrot.slane %v165, %v172
    %v175 = vunpack.c.l.s4 1983009808
    %v176 = vunpack.c.0.s8 %v175
    %v177 = vlaneseq
    %v178 = vshrl.u32 %v177, 7
    %v179 = vsub.s32 %v176, %v178
    %v180 = vrot.slane %v166, %v179
    %v181 = vcombine.low %v173, %v180
    %184 = vmatprep.subr.mxu0 %v121
    %185 = vmatpush1.msra.mxu0 %v120
    %186 = vmatprep.subr.mxu0 %v118
    %187 = vmatpush1.msra.mxu0 %v117
    %188 = vmatprep.subr.mxu0 %v115
    %189 = vmatpush1.msra.mxu0 %v114
    %190 = vmatprep.subr.mxu0 %v112
    %191 = vmatpush1.msra.mxu0 %v111
    %192 = vmatprep.subr.mxu0 %v109
    %193 = vmatpush1.msra.mxu0 %v108
    %194 = vmatprep.subr.mxu0 %v106
    %195 = vmatpush1.msra.mxu0 %v105
    %196 = vmatprep.subr.mxu0 %v103
    %197 = vmatpush1.msra.mxu0 %v102
    %198 = vmatprep.subr.mxu0 %v100
    %199 = vmatpush1.msra.mxu0 %v99
    %200 = vmatprep.subr.mxu0 %v97
    %201 = vmatpush1.msra.mxu0 %v96
    %202 = vmatprep.subr.mxu0 %v94
    %203 = vmatpush1.msra.mxu0 %v93
    %204 = vmatprep.subr.mxu0 %v91
    %205 = vmatpush1.msra.mxu0 %v90
    %206 = vmatprep.subr.mxu0 %v88
    %207 = vmatpush1.msra.mxu0 %v87
    %208 = vmatprep.subr.mxu0 %v85
    %209 = vmatpush1.msra.mxu0 %v84
    %210 = vmatprep.subr.mxu0 %v82
    %211 = vmatpush1.msra.mxu0 %v81
    %212 = vmatprep.subr.mxu0 %v79
    %213 = vmatpush1.msra.mxu0 %v78
    %214 = vmatprep.subr.mxu0 %v76
    %215 = vmatpush1.msra.mxu0 %v75
    %216 = vmatprep.subr.mxu0 0.0
    %217 = vmatpush2.msra.mxu0 0.0
    %218 = vmatprep.subr.mxu0 0.0
    %219 = vmatpush2.msra.mxu0 0.0
    %220 = vmatprep.subr.mxu0 0.0
    %221 = vmatpush2.msra.mxu0 0.0
    %222 = vmatprep.subr.mxu0 0.0
    %223 = vmatpush2.msra.mxu0 0.0
    %224 = vmatprep.subr.mxu0 0.0
    %225 = vmatpush2.msra.mxu0 0.0
    %226 = vmatprep.subr.mxu0 0.0
    %227 = vmatpush2.msra.mxu0 0.0
    %228 = vmatprep.subr.mxu0 0.0
    %229 = vmatpush2.msra.mxu0 0.0
    %230 = vmatprep.subr.mxu0 0.0
    %231 = vmatpush2.msra.mxu0 0.0
    %232 = vmatprep.subr.mxu0 0.0
    %233 = vmatpush2.msra.mxu0 0.0
    %234 = vmatprep.subr.mxu0 0.0
    %235 = vmatpush2.msra.mxu0 0.0
    %236 = vmatprep.subr.mxu0 0.0
    %237 = vmatpush2.msra.mxu0 0.0
    %238 = vmatprep.subr.mxu0 0.0
    %239 = vmatpush2.msra.mxu0 0.0
    %240 = vmatprep.subr.mxu0 0.0
    %241 = vmatpush2.msra.mxu0 0.0
    %242 = vmatprep.subr.mxu0 0.0
    %243 = vmatpush2.msra.mxu0 0.0
    %244 = vmatprep.subr.mxu0 0.0
    %245 = vmatpush2.msra.mxu0 0.0
    %246 = vmatprep.subr.mxu0 0.0
    %247 = vmatpush2.msra.mxu0 0.0
    %248 = vmatprep.mubr.f32.mxu0 0.0
    %249 = vmatmul.mubr.f32.gmra.mxu0 %v164
    %v250 = vpop.f32.mrf.mxu0
    %v251 = vadd.f32 %v128, %v250
    %v252 = vpop.f32.mrf.mxu0
    %v253 = vadd.f32 %v132, %v252
    %254 = vmatprep.mubr.f32.mxu0 0.0
    %255 = vmatmul.mubr.f32.gmra.mxu0 %v181
    %v256 = vpop.f32.mrf.mxu0
    %v257 = vadd.f32 %v128, %v256
    %v258 = vpop.f32.mrf.mxu0
    %v259 = vadd.f32 %v132, %v258
    %260 = vdwg.mxu0
    %261 = vmatprep.subr.mxu0 0.0
    %262 = vmatpush1.msra.mxu0 %v122
    %263 = vmatprep.subr.mxu0 0.0
    %264 = vmatpush1.msra.mxu0 %v119
    %265 = vmatprep.subr.mxu0 0.0
    %266 = vmatpush1.msra.mxu0 %v116
    %267 = vmatprep.subr.mxu0 0.0
    %268 = vmatpush1.msra.mxu0 %v113
    %269 = vmatprep.subr.mxu0 0.0
    %270 = vmatpush1.msra.mxu0 %v110
    %271 = vmatprep.subr.mxu0 0.0
    %272 = vmatpush1.msra.mxu0 %v107
    %273 = vmatprep.subr.mxu0 0.0
    %274 = vmatpush1.msra.mxu0 %v104
    %275 = vmatprep.subr.mxu0 0.0
    %276 = vmatpush1.msra.mxu0 %v101
    %277 = vmatprep.subr.mxu0 0.0
    %278 = vmatpush1.msra.mxu0 %v98
    %279 = vmatprep.subr.mxu0 0.0
    %280 = vmatpush1.msra.mxu0 %v95
    %281 = vmatprep.subr.mxu0 0.0
    %282 = vmatpush1.msra.mxu0 %v92
    %283 = vmatprep.subr.mxu0 0.0
    %284 = vmatpush1.msra.mxu0 %v89
    %285 = vmatprep.subr.mxu0 0.0
    %286 = vmatpush1.msra.mxu0 %v86
    %287 = vmatprep.subr.mxu0 0.0
    %288 = vmatpush1.msra.mxu0 %v83
    %289 = vmatprep.subr.mxu0 0.0
    %290 = vmatpush1.msra.mxu0 %v80
    %291 = vmatprep.subr.mxu0 0.0
    %292 = vmatpush1.msra.mxu0 %v77
    %293 = vmatprep.subr.mxu0 0.0
    %294 = vmatpush2.msra.mxu0 0.0
    %295 = vmatprep.subr.mxu0 0.0
    %296 = vmatpush2.msra.mxu0 0.0
    %297 = vmatprep.subr.mxu0 0.0
    %298 = vmatpush2.msra.mxu0 0.0
    %299 = vmatprep.subr.mxu0 0.0
    %300 = vmatpush2.msra.mxu0 0.0
    %301 = vmatprep.subr.mxu0 0.0
    %302 = vmatpush2.msra.mxu0 0.0
    %303 = vmatprep.subr.mxu0 0.0
    %304 = vmatpush2.msra.mxu0 0.0
    %305 = vmatprep.subr.mxu0 0.0
    %306 = vmatpush2.msra.mxu0 0.0
    %307 = vmatprep.subr.mxu0 0.0
    %308 = vmatpush2.msra.mxu0 0.0
    %309 = vmatprep.subr.mxu0 0.0
    %310 = vmatpush2.msra.mxu0 0.0
    %311 = vmatprep.subr.mxu0 0.0
    %312 = vmatpush2.msra.mxu0 0.0
    %313 = vmatprep.subr.mxu0 0.0
    %314 = vmatpush2.msra.mxu0 0.0
    %315 = vmatprep.subr.mxu0 0.0
    %316 = vmatpush2.msra.mxu0 0.0
    %317 = vmatprep.subr.mxu0 0.0
    %318 = vmatpush2.msra.mxu0 0.0
    %319 = vmatprep.subr.mxu0 0.0
    %320 = vmatpush2.msra.mxu0 0.0
    %321 = vmatprep.subr.mxu0 0.0
    %322 = vmatpush2.msra.mxu0 0.0
    %323 = vmatprep.subr.mxu0 0.0
    %324 = vmatpush2.msra.mxu0 0.0
    %325 = vmatprep.mubr.f32.mxu0 0.0
    %326 = vmatmul.mubr.f32.gmra.mxu0 %v164
    %v327 = vpop.f32.mrf.mxu0
    %v328 = vadd.f32 %v136, %v327
    %v329 = vpop.f32.mrf.mxu0
    %330 = vmatprep.mubr.f32.mxu0 0.0
    %331 = vmatmul.mubr.f32.gmra.mxu0 %v181
    %v332 = vpop.f32.mrf.mxu0
    %v333 = vadd.f32 %v136, %v332
    %v334 = vpop.f32.mrf.mxu0
    %335 = vdwg.mxu0
    %v342 = vcombine.low %v251, %v253
    %v343 = vcombine.high %v251, %v253
    %v344 = vcombine.high %v328, %v328
    %v346 = vunpack.c.l.s4 1983009808
    %v347 = vunpack.c.0.s8 %v346
    %v348 = vlaneseq
    %v349 = vshrl.u32 %v348, 7
    %v350 = vsub.s32 %v347, %v349
    %v351 = vrot.slane %v342, %v350
    %v353 = vunpack.c.l.s4 1983009808
    %v354 = vunpack.c.0.s8 %v353
    %v355 = vlaneseq
    %v356 = vshrl.u32 %v355, 7
    %v357 = vsub.s32 %v354, %v356
    %v358 = vrot.slane %v343, %v357
    %v360 = vunpack.c.l.s4 1983009808
    %v361 = vunpack.c.0.s8 %v360
    %v362 = vlaneseq
    %v363 = vshrl.u32 %v362, 7
    %v364 = vsub.s32 %v361, %v363
    %v365 = vrot.slane %v328, %v364
    %v367 = vunpack.c.l.s4 1983009808
    %v368 = vunpack.c.0.s8 %v367
    %v369 = vlaneseq
    %v370 = vshrl.u32 %v369, 7
    %v371 = vsub.s32 %v368, %v370
    %v372 = vrot.slane %v344, %v371
    %v373 = vcombine.low %v351, %v365
    %v374 = vcombine.high %v351, %v365
    %v375 = vcombine.low %v358, %v372
    %v376 = vcombine.high %v358, %v372
    %v377 = vcombine.low %v257, %v259
    %v378 = vcombine.high %v257, %v259
    %v379 = vcombine.high %v333, %v333
    %v381 = vunpack.c.l.s4 1983009808
    %v382 = vunpack.c.0.s8 %v381
    %v383 = vlaneseq
    %v384 = vshrl.u32 %v383, 7
    %v385 = vsub.s32 %v382, %v384
    %v386 = vrot.slane %v377, %v385
    %v388 = vunpack.c.l.s4 1983009808
    %v389 = vunpack.c.0.s8 %v388
    %v390 = vlaneseq
    %v391 = vshrl.u32 %v390, 7
    %v392 = vsub.s32 %v389, %v391
    %v393 = vrot.slane %v378, %v392
    %v395 = vunpack.c.l.s4 1983009808
    %v396 = vunpack.c.0.s8 %v395
    %v397 = vlaneseq
    %v398 = vshrl.u32 %v397, 7
    %v399 = vsub.s32 %v396, %v398
    %v400 = vrot.slane %v333, %v399
    %v402 = vunpack.c.l.s4 1983009808
    %v403 = vunpack.c.0.s8 %v402
    %v404 = vlaneseq
    %v405 = vshrl.u32 %v404, 7
    %v406 = vsub.s32 %v403, %v405
    %v407 = vrot.slane %v379, %v406
    %v408 = vcombine.low %v386, %v400
    %v409 = vcombine.high %v386, %v400
    %v410 = vcombine.low %v393, %v407
    %v411 = vcombine.high %v393, %v407
    %420 = vst [vmem:[#allocation3] sm:$0x3f] %v373
    %421 = vst [vmem:[#allocation3 + $0x6] sm:$0x3f] %v374
    %422 = vst [vmem:[#allocation3 + $0xc] sm:$0x3f] %v375
    %423 = vst [vmem:[#allocation3 + $0x12] sm:$0x3f] %v376
    %424 = vst [vmem:[#allocation3 + $0x18] sm:$0x3f] %v408
    %425 = vst [vmem:[#allocation3 + $0x1e] sm:$0x3f] %v409
    %426 = vst [vmem:[#allocation3 + $0x24] sm:$0x3f] %v410
    %427 = vst [vmem:[#allocation3 + $0x2a] sm:$0x3f] %v411
    %v428 = vld [vmem:[%s4] sm:$0x1]
    %v429 = vld [vmem:[#allocation2] sm:$0x3]
    %v430 = vld [vmem:[#allocation9] sm:$0xff]
    %v431 = vld [vmem:[#allocation9 + $0x8] sm:$0xff]
    %v432 = vld [vmem:[#allocation9 + $0x10] sm:$0xff]
    %v433 = vld [vmem:[#allocation9 + $0x18] sm:$0xff]
    %v434 = vld [vmem:[#allocation9 + $0x20] sm:$0xff]
    %v435 = vld [vmem:[#allocation9 + $0x28] sm:$0xff]
    %v436 = vld [vmem:[#allocation9 + $0x30] sm:$0xff]
    %v437 = vld [vmem:[#allocation9 + $0x38] sm:$0xff]
    %v438 = vld [vmem:[#allocation9 + $0x40] sm:$0xff]
    %v439 = vld [vmem:[#allocation9 + $0x48] sm:$0xff]
    %v440 = vld [vmem:[#allocation9 + $0x50] sm:$0xff]
    %v441 = vld [vmem:[#allocation9 + $0x58] sm:$0xff]
    %v442 = vld [vmem:[#allocation9 + $0x60] sm:$0xff]
    %v443 = vld [vmem:[#allocation9 + $0x68] sm:$0xff]
    %v444 = vld [vmem:[#allocation9 + $0x70] sm:$0xff]
    %v445 = vld [vmem:[#allocation9 + $0x78] sm:$0xff]
    %v446 = vld [vmem:[#allocation9 + $0x80] sm:$0xff]
    %v447 = vld [vmem:[#allocation9 + $0x88] sm:$0xff]
    %v448 = vld [vmem:[#allocation9 + $0x90] sm:$0xff]
    %v449 = vld [vmem:[#allocation9 + $0x98] sm:$0xff]
    %v450 = vld [vmem:[#allocation9 + $0xa0] sm:$0xff]
    %v451 = vld [vmem:[#allocation9 + $0xa8] sm:$0xff]
    %v452 = vld [vmem:[#allocation9 + $0xb0] sm:$0xff]
    %v453 = vld [vmem:[#allocation9 + $0xb8] sm:$0xff]
    %v454 = vld [vmem:[#allocation9 + $0xc0] sm:$0xff]
    %v455 = vld [vmem:[#allocation9 + $0xc8] sm:$0xff]
    %v456 = vld [vmem:[#allocation9 + $0xd0] sm:$0xff]
    %v457 = vld [vmem:[#allocation9 + $0xd8] sm:$0xff]
    %v458 = vld [vmem:[#allocation9 + $0xe0] sm:$0xff]
    %v459 = vld [vmem:[#allocation9 + $0xe8] sm:$0xff]
    %v460 = vld [vmem:[#allocation9 + $0xf0] sm:$0xff]
    %v461 = vld [vmem:[#allocation9 + $0xf8] sm:$0xff]
    %v462 = vld [vmem:[#allocation9 + $0x100] sm:$0xff]
    %v463 = vld [vmem:[#allocation9 + $0x108] sm:$0xff]
    %v464 = vld [vmem:[#allocation9 + $0x110] sm:$0xff]
    %v465 = vld [vmem:[#allocation9 + $0x118] sm:$0xff]
    %v466 = vld [vmem:[#allocation9 + $0x120] sm:$0xff]
    %v467 = vld [vmem:[#allocation9 + $0x128] sm:$0xff]
    %v468 = vld [vmem:[#allocation9 + $0x130] sm:$0xff]
    %v469 = vld [vmem:[#allocation9 + $0x138] sm:$0xff]
    %v470 = vld [vmem:[#allocation9 + $0x140] sm:$0xff]
    %v471 = vld [vmem:[#allocation9 + $0x148] sm:$0xff]
    %v472 = vld [vmem:[#allocation9 + $0x150] sm:$0xff]
    %v473 = vld [vmem:[#allocation9 + $0x158] sm:$0xff]
    %v474 = vld [vmem:[#allocation9 + $0x160] sm:$0xff]
    %v475 = vld [vmem:[#allocation9 + $0x168] sm:$0xff]
    %v476 = vld [vmem:[#allocation9 + $0x170] sm:$0xff]
    %v477 = vld [vmem:[#allocation9 + $0x178] sm:$0xff]
    %478 = vmatprep.subr.mxu0 %v476
    %479 = vmatpush1.msra.mxu0 %v475
    %480 = vmatprep.subr.mxu0 %v473
    %481 = vmatpush1.msra.mxu0 %v472
    %482 = vmatprep.subr.mxu0 %v470
    %483 = vmatpush1.msra.mxu0 %v469
    %484 = vmatprep.subr.mxu0 %v467
    %485 = vmatpush1.msra.mxu0 %v466
    %486 = vmatprep.subr.mxu0 %v464
    %487 = vmatpush1.msra.mxu0 %v463
    %488 = vmatprep.subr.mxu0 %v461
    %489 = vmatpush1.msra.mxu0 %v460
    %490 = vmatprep.subr.mxu0 %v458
    %491 = vmatpush1.msra.mxu0 %v457
    %492 = vmatprep.subr.mxu0 %v455
    %493 = vmatpush1.msra.mxu0 %v454
    %494 = vmatprep.subr.mxu0 %v452
    %495 = vmatpush1.msra.mxu0 %v451
    %496 = vmatprep.subr.mxu0 %v449
    %497 = vmatpush1.msra.mxu0 %v448
    %498 = vmatprep.subr.mxu0 %v446
    %499 = vmatpush1.msra.mxu0 %v445
    %500 = vmatprep.subr.mxu0 %v443
    %501 = vmatpush1.msra.mxu0 %v442
    %502 = vmatprep.subr.mxu0 %v440
    %503 = vmatpush1.msra.mxu0 %v439
    %504 = vmatprep.subr.mxu0 %v437
    %505 = vmatpush1.msra.mxu0 %v436
    %506 = vmatprep.subr.mxu0 %v434
    %507 = vmatpush1.msra.mxu0 %v433
    %508 = vmatprep.subr.mxu0 %v431
    %509 = vmatpush1.msra.mxu0 %v430
    %510 = vmatprep.subr.mxu0 0.0
    %511 = vmatpush2.msra.mxu0 0.0
    %512 = vmatprep.subr.mxu0 0.0
    %513 = vmatpush2.msra.mxu0 0.0
    %514 = vmatprep.subr.mxu0 0.0
    %515 = vmatpush2.msra.mxu0 0.0
    %516 = vmatprep.subr.mxu0 0.0
    %517 = vmatpush2.msra.mxu0 0.0
    %518 = vmatprep.subr.mxu0 0.0
    %519 = vmatpush2.msra.mxu0 0.0
    %520 = vmatprep.subr.mxu0 0.0
    %521 = vmatpush2.msra.mxu0 0.0
    %522 = vmatprep.subr.mxu0 0.0
    %523 = vmatpush2.msra.mxu0 0.0
    %524 = vmatprep.subr.mxu0 0.0
    %525 = vmatpush2.msra.mxu0 0.0
    %526 = vmatprep.subr.mxu0 0.0
    %527 = vmatpush2.msra.mxu0 0.0
    %528 = vmatprep.subr.mxu0 0.0
    %529 = vmatpush2.msra.mxu0 0.0
    %530 = vmatprep.subr.mxu0 0.0
    %531 = vmatpush2.msra.mxu0 0.0
    %532 = vmatprep.subr.mxu0 0.0
    %533 = vmatpush2.msra.mxu0 0.0
    %534 = vmatprep.subr.mxu0 0.0
    %535 = vmatpush2.msra.mxu0 0.0
    %536 = vmatprep.subr.mxu0 0.0
    %537 = vmatpush2.msra.mxu0 0.0
    %538 = vmatprep.subr.mxu0 0.0
    %539 = vmatpush2.msra.mxu0 0.0
    %540 = vmatprep.subr.mxu0 0.0
    %541 = vmatpush2.msra.mxu0 0.0
    %542 = vmatprep.mubr.f32.mxu0 0.0
    %543 = vmatmul.mubr.f32.gmra.mxu0 %v429
    %v544 = vpop.f32.mrf.mxu0
    %v545 = vadd.f32 0.0, %v544
    %v546 = vpop.f32.mrf.mxu0
    %v547 = vadd.f32 0.0, %v546
    %548 = vdwg.mxu0
    %549 = vmatprep.subr.mxu0 0.0
    %550 = vmatpush1.msra.mxu0 %v477
    %551 = vmatprep.subr.mxu0 0.0
    %552 = vmatpush1.msra.mxu0 %v474
    %553 = vmatprep.subr.mxu0 0.0
    %554 = vmatpush1.msra.mxu0 %v471
    %555 = vmatprep.subr.mxu0 0.0
    %556 = vmatpush1.msra.mxu0 %v468
    %557 = vmatprep.subr.mxu0 0.0
    %558 = vmatpush1.msra.mxu0 %v465
    %559 = vmatprep.subr.mxu0 0.0
    %560 = vmatpush1.msra.mxu0 %v462
    %561 = vmatprep.subr.mxu0 0.0
    %562 = vmatpush1.msra.mxu0 %v459
    %563 = vmatprep.subr.mxu0 0.0
    %564 = vmatpush1.msra.mxu0 %v456
    %565 = vmatprep.subr.mxu0 0.0
    %566 = vmatpush1.msra.mxu0 %v453
    %567 = vmatprep.subr.mxu0 0.0
    %568 = vmatpush1.msra.mxu0 %v450
    %569 = vmatprep.subr.mxu0 0.0
    %570 = vmatpush1.msra.mxu0 %v447
    %571 = vmatprep.subr.mxu0 0.0
    %572 = vmatpush1.msra.mxu0 %v444
    %573 = vmatprep.subr.mxu0 0.0
    %574 = vmatpush1.msra.mxu0 %v441
    %575 = vmatprep.subr.mxu0 0.0
    %576 = vmatpush1.msra.mxu0 %v438
    %577 = vmatprep.subr.mxu0 0.0
    %578 = vmatpush1.msra.mxu0 %v435
    %579 = vmatprep.subr.mxu0 0.0
    %580 = vmatpush1.msra.mxu0 %v432
    %581 = vmatprep.subr.mxu0 0.0
    %582 = vmatpush2.msra.mxu0 0.0
    %583 = vmatprep.subr.mxu0 0.0
    %584 = vmatpush2.msra.mxu0 0.0
    %585 = vmatprep.subr.mxu0 0.0
    %586 = vmatpush2.msra.mxu0 0.0
    %587 = vmatprep.subr.mxu0 0.0
    %588 = vmatpush2.msra.mxu0 0.0
    %589 = vmatprep.subr.mxu0 0.0
    %590 = vmatpush2.msra.mxu0 0.0
    %591 = vmatprep.subr.mxu0 0.0
    %592 = vmatpush2.msra.mxu0 0.0
    %593 = vmatprep.subr.mxu0 0.0
    %594 = vmatpush2.msra.mxu0 0.0
    %595 = vmatprep.subr.mxu0 0.0
    %596 = vmatpush2.msra.mxu0 0.0
    %597 = vmatprep.subr.mxu0 0.0
    %598 = vmatpush2.msra.mxu0 0.0
    %599 = vmatprep.subr.mxu0 0.0
    %600 = vmatpush2.msra.mxu0 0.0
    %601 = vmatprep.subr.mxu0 0.0
    %602 = vmatpush2.msra.mxu0 0.0
    %603 = vmatprep.subr.mxu0 0.0
    %604 = vmatpush2.msra.mxu0 0.0
    %605 = vmatprep.subr.mxu0 0.0
    %606 = vmatpush2.msra.mxu0 0.0
    %607 = vmatprep.subr.mxu0 0.0
    %608 = vmatpush2.msra.mxu0 0.0
    %609 = vmatprep.subr.mxu0 0.0
    %610 = vmatpush2.msra.mxu0 0.0
    %611 = vmatprep.subr.mxu0 0.0
    %612 = vmatpush2.msra.mxu0 0.0
    %613 = vmatprep.mubr.f32.mxu0 0.0
    %614 = vmatmul.mubr.f32.gmra.mxu0 %v429
    %v615 = vpop.f32.mrf.mxu0
    %v616 = vadd.f32 0.0, %v615
    %v617 = vpop.f32.mrf.mxu0
    %618 = vdwg.mxu0
    %v619 = vld [vmem:[#allocation3] sm:$0x3f]
    %v622 = vcombine.low %v545, %v547
    %v624 = vunpack.c.l.s4 1983009808
    %v625 = vunpack.c.0.s8 %v624
    %v626 = vlaneseq
    %v627 = vshrl.u32 %v626, 7
    %v628 = vsub.s32 %v625, %v627
    %v629 = vrot.slane %v622, %v628
    %v631 = vadd.f32 %v619, %v629
    %v632 = vxor.u32 %v631, 2147483648
    %v633 = vmul.f32 %v632, 1.442695
    %v634 = vpow.pop %v633
    %v635 = vadd.f32 %v634, 1.0
    %v636 = vrcp.pop %v635
    %v637 = vmul.f32 1.0, %v636
    %v639 = vlaneseq
    %v640 = vshrl.u32 %v639, 7
    %v641 = vsub.s32 0, %v640
    %v642 = vrot.slane %v428, %v641
    %v644 = vadd.f32 %v616, %v642
    %v645 = vmul.f32 %v637, %v644
    %v647 = vrot.slane %v619, 4
    %v649 = vadd.f32 %v647, %v645
    %v650 = vtanh.pop %v649
    %v651 = vsub.f32 %v429, %v650
    %v653 = vrot.slane %v637, 2
    %v655 = vmul.f32 %v653, %v651
    %v656 = vadd.f32 %v650, %v655
    %657 = vst [vmem:[#allocation10] sm:$0x3] %v656
    %v658 = vld [vmem:[#allocation9] sm:$0xff]
    %v659 = vld [vmem:[#allocation9 + $0x8] sm:$0xff]
    %v660 = vld [vmem:[#allocation9 + $0x10] sm:$0xff]
    %v661 = vld [vmem:[#allocation9 + $0x18] sm:$0xff]
    %v662 = vld [vmem:[#allocation9 + $0x20] sm:$0xff]
    %v663 = vld [vmem:[#allocation9 + $0x28] sm:$0xff]
    %v664 = vld [vmem:[#allocation9 + $0x30] sm:$0xff]
    %v665 = vld [vmem:[#allocation9 + $0x38] sm:$0xff]
    %v666 = vld [vmem:[#allocation9 + $0x40] sm:$0xff]
    %v667 = vld [vmem:[#allocation9 + $0x48] sm:$0xff]
    %v668 = vld [vmem:[#allocation9 + $0x50] sm:$0xff]
    %v669 = vld [vmem:[#allocation9 + $0x58] sm:$0xff]
    %v670 = vld [vmem:[#allocation9 + $0x60] sm:$0xff]
    %v671 = vld [vmem:[#allocation9 + $0x68] sm:$0xff]
    %v672 = vld [vmem:[#allocation9 + $0x70] sm:$0xff]
    %v673 = vld [vmem:[#allocation9 + $0x78] sm:$0xff]
    %v674 = vld [vmem:[#allocation9 + $0x80] sm:$0xff]
    %v675 = vld [vmem:[#allocation9 + $0x88] sm:$0xff]
    %v676 = vld [vmem:[#allocation9 + $0x90] sm:$0xff]
    %v677 = vld [vmem:[#allocation9 + $0x98] sm:$0xff]
    %v678 = vld [vmem:[#allocation9 + $0xa0] sm:$0xff]
    %v679 = vld [vmem:[#allocation9 + $0xa8] sm:$0xff]
    %v680 = vld [vmem:[#allocation9 + $0xb0] sm:$0xff]
    %v681 = vld [vmem:[#allocation9 + $0xb8] sm:$0xff]
    %v682 = vld [vmem:[#allocation9 + $0xc0] sm:$0xff]
    %v683 = vld [vmem:[#allocation9 + $0xc8] sm:$0xff]
    %v684 = vld [vmem:[#allocation9 + $0xd0] sm:$0xff]
    %v685 = vld [vmem:[#allocation9 + $0xd8] sm:$0xff]
    %v686 = vld [vmem:[#allocation9 + $0xe0] sm:$0xff]
    %v687 = vld [vmem:[#allocation9 + $0xe8] sm:$0xff]
    %v688 = vld [vmem:[#allocation9 + $0xf0] sm:$0xff]
    %v689 = vld [vmem:[#allocation9 + $0xf8] sm:$0xff]
    %v690 = vld [vmem:[#allocation9 + $0x100] sm:$0xff]
    %v691 = vld [vmem:[#allocation9 + $0x108] sm:$0xff]
    %v692 = vld [vmem:[#allocation9 + $0x110] sm:$0xff]
    %v693 = vld [vmem:[#allocation9 + $0x118] sm:$0xff]
    %v694 = vld [vmem:[#allocation9 + $0x120] sm:$0xff]
    %v695 = vld [vmem:[#allocation9 + $0x128] sm:$0xff]
    %v696 = vld [vmem:[#allocation9 + $0x130] sm:$0xff]
    %v697 = vld [vmem:[#allocation9 + $0x138] sm:$0xff]
    %v698 = vld [vmem:[#allocation9 + $0x140] sm:$0xff]
    %v699 = vld [vmem:[#allocation9 + $0x148] sm:$0xff]
    %v700 = vld [vmem:[#allocation9 + $0x150] sm:$0xff]
    %v701 = vld [vmem:[#allocation9 + $0x158] sm:$0xff]
    %v702 = vld [vmem:[#allocation9 + $0x160] sm:$0xff]
    %v703 = vld [vmem:[#allocation9 + $0x168] sm:$0xff]
    %v704 = vld [vmem:[#allocation9 + $0x170] sm:$0xff]
    %v705 = vld [vmem:[#allocation9 + $0x178] sm:$0xff]
    %706 = vmatprep.subr.mxu0 %v704
    %707 = vmatpush1.msra.mxu0 %v703
    %708 = vmatprep.subr.mxu0 %v701
    %709 = vmatpush1.msra.mxu0 %v700
    %710 = vmatprep.subr.mxu0 %v698
    %711 = vmatpush1.msra.mxu0 %v697
    %712 = vmatprep.subr.mxu0 %v695
    %713 = vmatpush1.msra.mxu0 %v694
    %714 = vmatprep.subr.mxu0 %v692
    %715 = vmatpush1.msra.mxu0 %v691
    %716 = vmatprep.subr.mxu0 %v689
    %717 = vmatpush1.msra.mxu0 %v688
    %718 = vmatprep.subr.mxu0 %v686
    %719 = vmatpush1.msra.mxu0 %v685
    %720 = vmatprep.subr.mxu0 %v683
    %721 = vmatpush1.msra.mxu0 %v682
    %722 = vmatprep.subr.mxu0 %v680
    %723 = vmatpush1.msra.mxu0 %v679
    %724 = vmatprep.subr.mxu0 %v677
    %725 = vmatpush1.msra.mxu0 %v676
    %726 = vmatprep.subr.mxu0 %v674
    %727 = vmatpush1.msra.mxu0 %v673
    %728 = vmatprep.subr.mxu0 %v671
    %729 = vmatpush1.msra.mxu0 %v670
    %730 = vmatprep.subr.mxu0 %v668
    %731 = vmatpush1.msra.mxu0 %v667
    %732 = vmatprep.subr.mxu0 %v665
    %733 = vmatpush1.msra.mxu0 %v664
    %734 = vmatprep.subr.mxu0 %v662
    %735 = vmatpush1.msra.mxu0 %v661
    %736 = vmatprep.subr.mxu0 %v659
    %737 = vmatpush1.msra.mxu0 %v658
    %738 = vmatprep.subr.mxu0 0.0
    %739 = vmatpush2.msra.mxu0 0.0
    %740 = vmatprep.subr.mxu0 0.0
    %741 = vmatpush2.msra.mxu0 0.0
    %742 = vmatprep.subr.mxu0 0.0
    %743 = vmatpush2.msra.mxu0 0.0
    %744 = vmatprep.subr.mxu0 0.0
    %745 = vmatpush2.msra.mxu0 0.0
    %746 = vmatprep.subr.mxu0 0.0
    %747 = vmatpush2.msra.mxu0 0.0
    %748 = vmatprep.subr.mxu0 0.0
    %749 = vmatpush2.msra.mxu0 0.0
    %750 = vmatprep.subr.mxu0 0.0
    %751 = vmatpush2.msra.mxu0 0.0
    %752 = vmatprep.subr.mxu0 0.0
    %753 = vmatpush2.msra.mxu0 0.0
    %754 = vmatprep.subr.mxu0 0.0
    %755 = vmatpush2.msra.mxu0 0.0
    %756 = vmatprep.subr.mxu0 0.0
    %757 = vmatpush2.msra.mxu0 0.0
    %758 = vmatprep.subr.mxu0 0.0
    %759 = vmatpush2.msra.mxu0 0.0
    %760 = vmatprep.subr.mxu0 0.0
    %761 = vmatpush2.msra.mxu0 0.0
    %762 = vmatprep.subr.mxu0 0.0
    %763 = vmatpush2.msra.mxu0 0.0
    %764 = vmatprep.subr.mxu0 0.0
    %765 = vmatpush2.msra.mxu0 0.0
    %766 = vmatprep.subr.mxu0 0.0
    %767 = vmatpush2.msra.mxu0 0.0
    %768 = vmatprep.subr.mxu0 0.0
    %769 = vmatpush2.msra.mxu0 0.0
    %770 = vmatprep.mubr.f32.mxu0 0.0
    %771 = vmatmul.mubr.f32.gmra.mxu0 %v656
    %v772 = vpop.f32.mrf.mxu0
    %v773 = vadd.f32 0.0, %v772
    %v774 = vpop.f32.mrf.mxu0
    %v775 = vadd.f32 0.0, %v774
    %776 = vdwg.mxu0
    %777 = vmatprep.subr.mxu0 0.0
    %778 = vmatpush1.msra.mxu0 %v705
    %779 = vmatprep.subr.mxu0 0.0
    %780 = vmatpush1.msra.mxu0 %v702
    %781 = vmatprep.subr.mxu0 0.0
    %782 = vmatpush1.msra.mxu0 %v699
    %783 = vmatprep.subr.mxu0 0.0
    %784 = vmatpush1.msra.mxu0 %v696
    %785 = vmatprep.subr.mxu0 0.0
    %786 = vmatpush1.msra.mxu0 %v693
    %787 = vmatprep.subr.mxu0 0.0
    %788 = vmatpush1.msra.mxu0 %v690
    %789 = vmatprep.subr.mxu0 0.0
    %790 = vmatpush1.msra.mxu0 %v687
    %791 = vmatprep.subr.mxu0 0.0
    %792 = vmatpush1.msra.mxu0 %v684
    %793 = vmatprep.subr.mxu0 0.0
    %794 = vmatpush1.msra.mxu0 %v681
    %795 = vmatprep.subr.mxu0 0.0
    %796 = vmatpush1.msra.mxu0 %v678
    %797 = vmatprep.subr.mxu0 0.0
    %798 = vmatpush1.msra.mxu0 %v675
    %799 = vmatprep.subr.mxu0 0.0
    %800 = vmatpush1.msra.mxu0 %v672
    %801 = vmatprep.subr.mxu0 0.0
    %802 = vmatpush1.msra.mxu0 %v669
    %803 = vmatprep.subr.mxu0 0.0
    %804 = vmatpush1.msra.mxu0 %v666
    %805 = vmatprep.subr.mxu0 0.0
    %806 = vmatpush1.msra.mxu0 %v663
    %807 = vmatprep.subr.mxu0 0.0
    %808 = vmatpush1.msra.mxu0 %v660
    %809 = vmatprep.subr.mxu0 0.0
    %810 = vmatpush2.msra.mxu0 0.0
    %811 = vmatprep.subr.mxu0 0.0
    %812 = vmatpush2.msra.mxu0 0.0
    %813 = vmatprep.subr.mxu0 0.0
    %814 = vmatpush2.msra.mxu0 0.0
    %815 = vmatprep.subr.mxu0 0.0
    %816 = vmatpush2.msra.mxu0 0.0
    %817 = vmatprep.subr.mxu0 0.0
    %818 = vmatpush2.msra.mxu0 0.0
    %819 = vmatprep.subr.mxu0 0.0
    %820 = vmatpush2.msra.mxu0 0.0
    %821 = vmatprep.subr.mxu0 0.0
    %822 = vmatpush2.msra.mxu0 0.0
    %823 = vmatprep.subr.mxu0 0.0
    %824 = vmatpush2.msra.mxu0 0.0
    %825 = vmatprep.subr.mxu0 0.0
    %826 = vmatpush2.msra.mxu0 0.0
    %827 = vmatprep.subr.mxu0 0.0
    %828 = vmatpush2.msra.mxu0 0.0
    %829 = vmatprep.subr.mxu0 0.0
    %830 = vmatpush2.msra.mxu0 0.0
    %831 = vmatprep.subr.mxu0 0.0
    %832 = vmatpush2.msra.mxu0 0.0
    %833 = vmatprep.subr.mxu0 0.0
    %834 = vmatpush2.msra.mxu0 0.0
    %835 = vmatprep.subr.mxu0 0.0
    %836 = vmatpush2.msra.mxu0 0.0
    %837 = vmatprep.subr.mxu0 0.0
    %838 = vmatpush2.msra.mxu0 0.0
    %839 = vmatprep.subr.mxu0 0.0
    %840 = vmatpush2.msra.mxu0 0.0
    %841 = vmatprep.mubr.f32.mxu0 0.0
    %842 = vmatmul.mubr.f32.gmra.mxu0 %v656
    %v843 = vpop.f32.mrf.mxu0
    %v844 = vadd.f32 0.0, %v843
    %v845 = vpop.f32.mrf.mxu0
    %846 = vdwg.mxu0
    %s847 = scalar_lea.vmem [#allocation3], 6
    %v848 = vld [vmem:[%s847] sm:$0x3f]
    %v851 = vcombine.low %v773, %v775
    %v853 = vunpack.c.l.s4 1983009808
    %v854 = vunpack.c.0.s8 %v853
    %v855 = vlaneseq
    %v856 = vshrl.u32 %v855, 7
    %v857 = vsub.s32 %v854, %v856
    %v858 = vrot.slane %v851, %v857
    %v860 = vadd.f32 %v848, %v858
    %v861 = vxor.u32 %v860, 2147483648
    %v862 = vmul.f32 %v861, 1.442695
    %v863 = vpow.pop %v862
    %v864 = vadd.f32 %v863, 1.0
    %v865 = vrcp.pop %v864
    %v866 = vmul.f32 1.0, %v865
    %v867 = vadd.f32 %v844, %v642
    %v868 = vmul.f32 %v866, %v867
    %v870 = vrot.slane %v848, 4
    %v872 = vadd.f32 %v870, %v868
    %v873 = vtanh.pop %v872
    %v874 = vsub.f32 %v656, %v873
    %v876 = vrot.slane %v866, 2
    %v878 = vmul.f32 %v876, %v874
    %v879 = vadd.f32 %v873, %v878
    %s880 = scalar_lea.vmem [#allocation10], 2
    %881 = vst [vmem:[%s880] sm:$0x3] %v879
    %v882 = vld [vmem:[#allocation9] sm:$0xff]
    %v883 = vld [vmem:[#allocation9 + $0x8] sm:$0xff]
    %v884 = vld [vmem:[#allocation9 + $0x10] sm:$0xff]
    %v885 = vld [vmem:[#allocation9 + $0x18] sm:$0xff]
    %v886 = vld [vmem:[#allocation9 + $0x20] sm:$0xff]
    %v887 = vld [vmem:[#allocation9 + $0x28] sm:$0xff]
    %v888 = vld [vmem:[#allocation9 + $0x30] sm:$0xff]
    %v889 = vld [vmem:[#allocation9 + $0x38] sm:$0xff]
    %v890 = vld [vmem:[#allocation9 + $0x40] sm:$0xff]
    %v891 = vld [vmem:[#allocation9 + $0x48] sm:$0xff]
    %v892 = vld [vmem:[#allocation9 + $0x50] sm:$0xff]
    %v893 = vld [vmem:[#allocation9 + $0x58] sm:$0xff]
    %v894 = vld [vmem:[#allocation9 + $0x60] sm:$0xff]
    %v895 = vld [vmem:[#allocation9 + $0x68] sm:$0xff]
    %v896 = vld [vmem:[#allocation9 + $0x70] sm:$0xff]
    %v897 = vld [vmem:[#allocation9 + $0x78] sm:$0xff]
    %v898 = vld [vmem:[#allocation9 + $0x80] sm:$0xff]
    %v899 = vld [vmem:[#allocation9 + $0x88] sm:$0xff]
    %v900 = vld [vmem:[#allocation9 + $0x90] sm:$0xff]
    %v901 = vld [vmem:[#allocation9 + $0x98] sm:$0xff]
    %v902 = vld [vmem:[#allocation9 + $0xa0] sm:$0xff]
    %v903 = vld [vmem:[#allocation9 + $0xa8] sm:$0xff]
    %v904 = vld [vmem:[#allocation9 + $0xb0] sm:$0xff]
    %v905 = vld [vmem:[#allocation9 + $0xb8] sm:$0xff]
    %v906 = vld [vmem:[#allocation9 + $0xc0] sm:$0xff]
    %v907 = vld [vmem:[#allocation9 + $0xc8] sm:$0xff]
    %v908 = vld [vmem:[#allocation9 + $0xd0] sm:$0xff]
    %v909 = vld [vmem:[#allocation9 + $0xd8] sm:$0xff]
    %v910 = vld [vmem:[#allocation9 + $0xe0] sm:$0xff]
    %v911 = vld [vmem:[#allocation9 + $0xe8] sm:$0xff]
    %v912 = vld [vmem:[#allocation9 + $0xf0] sm:$0xff]
    %v913 = vld [vmem:[#allocation9 + $0xf8] sm:$0xff]
    %v914 = vld [vmem:[#allocation9 + $0x100] sm:$0xff]
    %v915 = vld [vmem:[#allocation9 + $0x108] sm:$0xff]
    %v916 = vld [vmem:[#allocation9 + $0x110] sm:$0xff]
    %v917 = vld [vmem:[#allocation9 + $0x118] sm:$0xff]
    %v918 = vld [vmem:[#allocation9 + $0x120] sm:$0xff]
    %v919 = vld [vmem:[#allocation9 + $0x128] sm:$0xff]
    %v920 = vld [vmem:[#allocation9 + $0x130] sm:$0xff]
    %v921 = vld [vmem:[#allocation9 + $0x138] sm:$0xff]
    %v922 = vld [vmem:[#allocation9 + $0x140] sm:$0xff]
    %v923 = vld [vmem:[#allocation9 + $0x148] sm:$0xff]
    %v924 = vld [vmem:[#allocation9 + $0x150] sm:$0xff]
    %v925 = vld [vmem:[#allocation9 + $0x158] sm:$0xff]
    %v926 = vld [vmem:[#allocation9 + $0x160] sm:$0xff]
    %v927 = vld [vmem:[#allocation9 + $0x168] sm:$0xff]
    %v928 = vld [vmem:[#allocation9 + $0x170] sm:$0xff]
    %v929 = vld [vmem:[#allocation9 + $0x178] sm:$0xff]
    %930 = vmatprep.subr.mxu0 %v928
    %931 = vmatpush1.msra.mxu0 %v927
    %932 = vmatprep.subr.mxu0 %v925
    %933 = vmatpush1.msra.mxu0 %v924
    %934 = vmatprep.subr.mxu0 %v922
    %935 = vmatpush1.msra.mxu0 %v921
    %936 = vmatprep.subr.mxu0 %v919
    %937 = vmatpush1.msra.mxu0 %v918
    %938 = vmatprep.subr.mxu0 %v916
    %939 = vmatpush1.msra.mxu0 %v915
    %940 = vmatprep.subr.mxu0 %v913
    %941 = vmatpush1.msra.mxu0 %v912
    %942 = vmatprep.subr.mxu0 %v910
    %943 = vmatpush1.msra.mxu0 %v909
    %944 = vmatprep.subr.mxu0 %v907
    %945 = vmatpush1.msra.mxu0 %v906
    %946 = vmatprep.subr.mxu0 %v904
    %947 = vmatpush1.msra.mxu0 %v903
    %948 = vmatprep.subr.mxu0 %v901
    %949 = vmatpush1.msra.mxu0 %v900
    %950 = vmatprep.subr.mxu0 %v898
    %951 = vmatpush1.msra.mxu0 %v897
    %952 = vmatprep.subr.mxu0 %v895
    %953 = vmatpush1.msra.mxu0 %v894
    %954 = vmatprep.subr.mxu0 %v892
    %955 = vmatpush1.msra.mxu0 %v891
    %956 = vmatprep.subr.mxu0 %v889
    %957 = vmatpush1.msra.mxu0 %v888
    %958 = vmatprep.subr.mxu0 %v886
    %959 = vmatpush1.msra.mxu0 %v885
    %960 = vmatprep.subr.mxu0 %v883
    %961 = vmatpush1.msra.mxu0 %v882
    %962 = vmatprep.subr.mxu0 0.0
    %963 = vmatpush2.msra.mxu0 0.0
    %964 = vmatprep.subr.mxu0 0.0
    %965 = vmatpush2.msra.mxu0 0.0
    %966 = vmatprep.subr.mxu0 0.0
    %967 = vmatpush2.msra.mxu0 0.0
    %968 = vmatprep.subr.mxu0 0.0
    %969 = vmatpush2.msra.mxu0 0.0
    %970 = vmatprep.subr.mxu0 0.0
    %971 = vmatpush2.msra.mxu0 0.0
    %972 = vmatprep.subr.mxu0 0.0
    %973 = vmatpush2.msra.mxu0 0.0
    %974 = vmatprep.subr.mxu0 0.0
    %975 = vmatpush2.msra.mxu0 0.0
    %976 = vmatprep.subr.mxu0 0.0
    %977 = vmatpush2.msra.mxu0 0.0
    %978 = vmatprep.subr.mxu0 0.0
    %979 = vmatpush2.msra.mxu0 0.0
    %980 = vmatprep.subr.mxu0 0.0
    %981 = vmatpush2.msra.mxu0 0.0
    %982 = vmatprep.subr.mxu0 0.0
    %983 = vmatpush2.msra.mxu0 0.0
    %984 = vmatprep.subr.mxu0 0.0
    %985 = vmatpush2.msra.mxu0 0.0
    %986 = vmatprep.subr.mxu0 0.0
    %987 = vmatpush2.msra.mxu0 0.0
    %988 = vmatprep.subr.mxu0 0.0
    %989 = vmatpush2.msra.mxu0 0.0
    %990 = vmatprep.subr.mxu0 0.0
    %991 = vmatpush2.msra.mxu0 0.0
    %992 = vmatprep.subr.mxu0 0.0
    %993 = vmatpush2.msra.mxu0 0.0
    %994 = vmatprep.mubr.f32.mxu0 0.0
    %995 = vmatmul.mubr.f32.gmra.mxu0 %v879
    %v996 = vpop.f32.mrf.mxu0
    %v997 = vadd.f32 0.0, %v996
    %v998 = vpop.f32.mrf.mxu0
    %v999 = vadd.f32 0.0, %v998
    %1000 = vdwg.mxu0
    %1001 = vmatprep.subr.mxu0 0.0
    %1002 = vmatpush1.msra.mxu0 %v929
    %1003 = vmatprep.subr.mxu0 0.0
    %1004 = vmatpush1.msra.mxu0 %v926
    %1005 = vmatprep.subr.mxu0 0.0
    %1006 = vmatpush1.msra.mxu0 %v923
    %1007 = vmatprep.subr.mxu0 0.0
    %1008 = vmatpush1.msra.mxu0 %v920
    %1009 = vmatprep.subr.mxu0 0.0
    %1010 = vmatpush1.msra.mxu0 %v917
    %1011 = vmatprep.subr.mxu0 0.0
    %1012 = vmatpush1.msra.mxu0 %v914
    %1013 = vmatprep.subr.mxu0 0.0
    %1014 = vmatpush1.msra.mxu0 %v911
    %1015 = vmatprep.subr.mxu0 0.0
    %1016 = vmatpush1.msra.mxu0 %v908
    %1017 = vmatprep.subr.mxu0 0.0
    %1018 = vmatpush1.msra.mxu0 %v905
    %1019 = vmatprep.subr.mxu0 0.0
    %1020 = vmatpush1.msra.mxu0 %v902
    %1021 = vmatprep.subr.mxu0 0.0
    %1022 = vmatpush1.msra.mxu0 %v899
    %1023 = vmatprep.subr.mxu0 0.0
    %1024 = vmatpush1.msra.mxu0 %v896
    %1025 = vmatprep.subr.mxu0 0.0
    %1026 = vmatpush1.msra.mxu0 %v893
    %1027 = vmatprep.subr.mxu0 0.0
    %1028 = vmatpush1.msra.mxu0 %v890
    %1029 = vmatprep.subr.mxu0 0.0
    %1030 = vmatpush1.msra.mxu0 %v887
    %1031 = vmatprep.subr.mxu0 0.0
    %1032 = vmatpush1.msra.mxu0 %v884
    %1033 = vmatprep.subr.mxu0 0.0
    %1034 = vmatpush2.msra.mxu0 0.0
    %1035 = vmatprep.subr.mxu0 0.0
    %1036 = vmatpush2.msra.mxu0 0.0
    %1037 = vmatprep.subr.mxu0 0.0
    %1038 = vmatpush2.msra.mxu0 0.0
    %1039 = vmatprep.subr.mxu0 0.0
    %1040 = vmatpush2.msra.mxu0 0.0
    %1041 = vmatprep.subr.mxu0 0.0
    %1042 = vmatpush2.msra.mxu0 0.0
    %1043 = vmatprep.subr.mxu0 0.0
    %1044 = vmatpush2.msra.mxu0 0.0
    %1045 = vmatprep.subr.mxu0 0.0
    %1046 = vmatpush2.msra.mxu0 0.0
    %1047 = vmatprep.subr.mxu0 0.0
    %1048 = vmatpush2.msra.mxu0 0.0
    %1049 = vmatprep.subr.mxu0 0.0
    %1050 = vmatpush2.msra.mxu0 0.0
    %1051 = vmatprep.subr.mxu0 0.0
    %1052 = vmatpush2.msra.mxu0 0.0
    %1053 = vmatprep.subr.mxu0 0.0
    %1054 = vmatpush2.msra.mxu0 0.0
    %1055 = vmatprep.subr.mxu0 0.0
    %1056 = vmatpush2.msra.mxu0 0.0
    %1057 = vmatprep.subr.mxu0 0.0
    %1058 = vmatpush2.msra.mxu0 0.0
    %1059 = vmatprep.subr.mxu0 0.0
    %1060 = vmatpush2.msra.mxu0 0.0
    %1061 = vmatprep.subr.mxu0 0.0
    %1062 = vmatpush2.msra.mxu0 0.0
    %1063 = vmatprep.subr.mxu0 0.0
    %1064 = vmatpush2.msra.mxu0 0.0
    %1065 = vmatprep.mubr.f32.mxu0 0.0
    %1066 = vmatmul.mubr.f32.gmra.mxu0 %v879
    %v1067 = vpop.f32.mrf.mxu0
    %v1068 = vadd.f32 0.0, %v1067
    %v1069 = vpop.f32.mrf.mxu0
    %1070 = vdwg.mxu0
    %s1071 = scalar_lea.vmem [#allocation3], 12
    %v1072 = vld [vmem:[%s1071] sm:$0x3f]
    %v1075 = vcombine.low %v997, %v999
    %v1077 = vunpack.c.l.s4 1983009808
    %v1078 = vunpack.c.0.s8 %v1077
    %v1079 = vlaneseq
    %v1080 = vshrl.u32 %v1079, 7
    %v1081 = vsub.s32 %v1078, %v1080
    %v1082 = vrot.slane %v1075, %v1081
    %v1084 = vadd.f32 %v1072, %v1082
    %v1085 = vxor.u32 %v1084, 2147483648
    %v1086 = vmul.f32 %v1085, 1.442695
    %v1087 = vpow.pop %v1086
    %v1088 = vadd.f32 %v1087, 1.0
    %v1089 = vrcp.pop %v1088
    %v1090 = vmul.f32 1.0, %v1089
    %v1091 = vadd.f32 %v1068, %v642
    %v1092 = vmul.f32 %v1090, %v1091
    %v1094 = vrot.slane %v1072, 4
    %v1096 = vadd.f32 %v1094, %v1092
    %v1097 = vtanh.pop %v1096
    %v1098 = vsub.f32 %v879, %v1097
    %v1100 = vrot.slane %v1090, 2
    %v1102 = vmul.f32 %v1100, %v1098
    %v1103 = vadd.f32 %v1097, %v1102
    %s1104 = scalar_lea.vmem [#allocation10], 4
    %1105 = vst [vmem:[%s1104] sm:$0x3] %v1103
    %v1106 = vld [vmem:[#allocation9] sm:$0xff]
    %v1107 = vld [vmem:[#allocation9 + $0x8] sm:$0xff]
    %v1108 = vld [vmem:[#allocation9 + $0x10] sm:$0xff]
    %v1109 = vld [vmem:[#allocation9 + $0x18] sm:$0xff]
    %v1110 = vld [vmem:[#allocation9 + $0x20] sm:$0xff]
    %v1111 = vld [vmem:[#allocation9 + $0x28] sm:$0xff]
    %v1112 = vld [vmem:[#allocation9 + $0x30] sm:$0xff]
    %v1113 = vld [vmem:[#allocation9 + $0x38] sm:$0xff]
    %v1114 = vld [vmem:[#allocation9 + $0x40] sm:$0xff]
    %v1115 = vld [vmem:[#allocation9 + $0x48] sm:$0xff]
    %v1116 = vld [vmem:[#allocation9 + $0x50] sm:$0xff]
    %v1117 = vld [vmem:[#allocation9 + $0x58] sm:$0xff]
    %v1118 = vld [vmem:[#allocation9 + $0x60] sm:$0xff]
    %v1119 = vld [vmem:[#allocation9 + $0x68] sm:$0xff]
    %v1120 = vld [vmem:[#allocation9 + $0x70] sm:$0xff]
    %v1121 = vld [vmem:[#allocation9 + $0x78] sm:$0xff]
    %v1122 = vld [vmem:[#allocation9 + $0x80] sm:$0xff]
    %v1123 = vld [vmem:[#allocation9 + $0x88] sm:$0xff]
    %v1124 = vld [vmem:[#allocation9 + $0x90] sm:$0xff]
    %v1125 = vld [vmem:[#allocation9 + $0x98] sm:$0xff]
    %v1126 = vld [vmem:[#allocation9 + $0xa0] sm:$0xff]
    %v1127 = vld [vmem:[#allocation9 + $0xa8] sm:$0xff]
    %v1128 = vld [vmem:[#allocation9 + $0xb0] sm:$0xff]
    %v1129 = vld [vmem:[#allocation9 + $0xb8] sm:$0xff]
    %v1130 = vld [vmem:[#allocation9 + $0xc0] sm:$0xff]
    %v1131 = vld [vmem:[#allocation9 + $0xc8] sm:$0xff]
    %v1132 = vld [vmem:[#allocation9 + $0xd0] sm:$0xff]
    %v1133 = vld [vmem:[#allocation9 + $0xd8] sm:$0xff]
    %v1134 = vld [vmem:[#allocation9 + $0xe0] sm:$0xff]
    %v1135 = vld [vmem:[#allocation9 + $0xe8] sm:$0xff]
    %v1136 = vld [vmem:[#allocation9 + $0xf0] sm:$0xff]
    %v1137 = vld [vmem:[#allocation9 + $0xf8] sm:$0xff]
    %v1138 = vld [vmem:[#allocation9 + $0x100] sm:$0xff]
    %v1139 = vld [vmem:[#allocation9 + $0x108] sm:$0xff]
    %v1140 = vld [vmem:[#allocation9 + $0x110] sm:$0xff]
    %v1141 = vld [vmem:[#allocation9 + $0x118] sm:$0xff]
    %v1142 = vld [vmem:[#allocation9 + $0x120] sm:$0xff]
    %v1143 = vld [vmem:[#allocation9 + $0x128] sm:$0xff]
    %v1144 = vld [vmem:[#allocation9 + $0x130] sm:$0xff]
    %v1145 = vld [vmem:[#allocation9 + $0x138] sm:$0xff]
    %v1146 = vld [vmem:[#allocation9 + $0x140] sm:$0xff]
    %v1147 = vld [vmem:[#allocation9 + $0x148] sm:$0xff]
    %v1148 = vld [vmem:[#allocation9 + $0x150] sm:$0xff]
    %v1149 = vld [vmem:[#allocation9 + $0x158] sm:$0xff]
    %v1150 = vld [vmem:[#allocation9 + $0x160] sm:$0xff]
    %v1151 = vld [vmem:[#allocation9 + $0x168] sm:$0xff]
    %v1152 = vld [vmem:[#allocation9 + $0x170] sm:$0xff]
    %v1153 = vld [vmem:[#allocation9 + $0x178] sm:$0xff]
    %1154 = vmatprep.subr.mxu0 %v1152
    %1155 = vmatpush1.msra.mxu0 %v1151
    %1156 = vmatprep.subr.mxu0 %v1149
    %1157 = vmatpush1.msra.mxu0 %v1148
    %1158 = vmatprep.subr.mxu0 %v1146
    %1159 = vmatpush1.msra.mxu0 %v1145
    %1160 = vmatprep.subr.mxu0 %v1143
    %1161 = vmatpush1.msra.mxu0 %v1142
    %1162 = vmatprep.subr.mxu0 %v1140
    %1163 = vmatpush1.msra.mxu0 %v1139
    %1164 = vmatprep.subr.mxu0 %v1137
    %1165 = vmatpush1.msra.mxu0 %v1136
    %1166 = vmatprep.subr.mxu0 %v1134
    %1167 = vmatpush1.msra.mxu0 %v1133
    %1168 = vmatprep.subr.mxu0 %v1131
    %1169 = vmatpush1.msra.mxu0 %v1130
    %1170 = vmatprep.subr.mxu0 %v1128
    %1171 = vmatpush1.msra.mxu0 %v1127
    %1172 = vmatprep.subr.mxu0 %v1125
    %1173 = vmatpush1.msra.mxu0 %v1124
    %1174 = vmatprep.subr.mxu0 %v1122
    %1175 = vmatpush1.msra.mxu0 %v1121
    %1176 = vmatprep.subr.mxu0 %v1119
    %1177 = vmatpush1.msra.mxu0 %v1118
    %1178 = vmatprep.subr.mxu0 %v1116
    %1179 = vmatpush1.msra.mxu0 %v1115
    %1180 = vmatprep.subr.mxu0 %v1113
    %1181 = vmatpush1.msra.mxu0 %v1112
    %1182 = vmatprep.subr.mxu0 %v1110
    %1183 = vmatpush1.msra.mxu0 %v1109
    %1184 = vmatprep.subr.mxu0 %v1107
    %1185 = vmatpush1.msra.mxu0 %v1106
    %1186 = vmatprep.subr.mxu0 0.0
    %1187 = vmatpush2.msra.mxu0 0.0
    %1188 = vmatprep.subr.mxu0 0.0
    %1189 = vmatpush2.msra.mxu0 0.0
    %1190 = vmatprep.subr.mxu0 0.0
    %1191 = vmatpush2.msra.mxu0 0.0
    %1192 = vmatprep.subr.mxu0 0.0
    %1193 = vmatpush2.msra.mxu0 0.0
    %1194 = vmatprep.subr.mxu0 0.0
    %1195 = vmatpush2.msra.mxu0 0.0
    %1196 = vmatprep.subr.mxu0 0.0
    %1197 = vmatpush2.msra.mxu0 0.0
    %1198 = vmatprep.subr.mxu0 0.0
    %1199 = vmatpush2.msra.mxu0 0.0
    %1200 = vmatprep.subr.mxu0 0.0
    %1201 = vmatpush2.msra.mxu0 0.0
    %1202 = vmatprep.subr.mxu0 0.0
    %1203 = vmatpush2.msra.mxu0 0.0
    %1204 = vmatprep.subr.mxu0 0.0
    %1205 = vmatpush2.msra.mxu0 0.0
    %1206 = vmatprep.subr.mxu0 0.0
    %1207 = vmatpush2.msra.mxu0 0.0
    %1208 = vmatprep.subr.mxu0 0.0
    %1209 = vmatpush2.msra.mxu0 0.0
    %1210 = vmatprep.subr.mxu0 0.0
    %1211 = vmatpush2.msra.mxu0 0.0
    %1212 = vmatprep.subr.mxu0 0.0
    %1213 = vmatpush2.msra.mxu0 0.0
    %1214 = vmatprep.subr.mxu0 0.0
    %1215 = vmatpush2.msra.mxu0 0.0
    %1216 = vmatprep.subr.mxu0 0.0
    %1217 = vmatpush2.msra.mxu0 0.0
    %1218 = vmatprep.mubr.f32.mxu0 0.0
    %1219 = vmatmul.mubr.f32.gmra.mxu0 %v1103
    %v1220 = vpop.f32.mrf.mxu0
    %v1221 = vadd.f32 0.0, %v1220
    %v1222 = vpop.f32.mrf.mxu0
    %v1223 = vadd.f32 0.0, %v1222
    %1224 = vdwg.mxu0
    %1225 = vmatprep.subr.mxu0 0.0
    %1226 = vmatpush1.msra.mxu0 %v1153
    %1227 = vmatprep.subr.mxu0 0.0
    %1228 = vmatpush1.msra.mxu0 %v1150
    %1229 = vmatprep.subr.mxu0 0.0
    %1230 = vmatpush1.msra.mxu0 %v1147
    %1231 = vmatprep.subr.mxu0 0.0
    %1232 = vmatpush1.msra.mxu0 %v1144
    %1233 = vmatprep.subr.mxu0 0.0
    %1234 = vmatpush1.msra.mxu0 %v1141
    %1235 = vmatprep.subr.mxu0 0.0
    %1236 = vmatpush1.msra.mxu0 %v1138
    %1237 = vmatprep.subr.mxu0 0.0
    %1238 = vmatpush1.msra.mxu0 %v1135
    %1239 = vmatprep.subr.mxu0 0.0
    %1240 = vmatpush1.msra.mxu0 %v1132
    %1241 = vmatprep.subr.mxu0 0.0
    %1242 = vmatpush1.msra.mxu0 %v1129
    %1243 = vmatprep.subr.mxu0 0.0
    %1244 = vmatpush1.msra.mxu0 %v1126
    %1245 = vmatprep.subr.mxu0 0.0
    %1246 = vmatpush1.msra.mxu0 %v1123
    %1247 = vmatprep.subr.mxu0 0.0
    %1248 = vmatpush1.msra.mxu0 %v1120
    %1249 = vmatprep.subr.mxu0 0.0
    %1250 = vmatpush1.msra.mxu0 %v1117
    %1251 = vmatprep.subr.mxu0 0.0
    %1252 = vmatpush1.msra.mxu0 %v1114
    %1253 = vmatprep.subr.mxu0 0.0
    %1254 = vmatpush1.msra.mxu0 %v1111
    %1255 = vmatprep.subr.mxu0 0.0
    %1256 = vmatpush1.msra.mxu0 %v1108
    %1257 = vmatprep.subr.mxu0 0.0
    %1258 = vmatpush2.msra.mxu0 0.0
    %1259 = vmatprep.subr.mxu0 0.0
    %1260 = vmatpush2.msra.mxu0 0.0
    %1261 = vmatprep.subr.mxu0 0.0
    %1262 = vmatpush2.msra.mxu0 0.0
    %1263 = vmatprep.subr.mxu0 0.0
    %1264 = vmatpush2.msra.mxu0 0.0
    %1265 = vmatprep.subr.mxu0 0.0
    %1266 = vmatpush2.msra.mxu0 0.0
    %1267 = vmatprep.subr.mxu0 0.0
    %1268 = vmatpush2.msra.mxu0 0.0
    %1269 = vmatprep.subr.mxu0 0.0
    %1270 = vmatpush2.msra.mxu0 0.0
    %1271 = vmatprep.subr.mxu0 0.0
    %1272 = vmatpush2.msra.mxu0 0.0
    %1273 = vmatprep.subr.mxu0 0.0
    %1274 = vmatpush2.msra.mxu0 0.0
    %1275 = vmatprep.subr.mxu0 0.0
    %1276 = vmatpush2.msra.mxu0 0.0
    %1277 = vmatprep.subr.mxu0 0.0
    %1278 = vmatpush2.msra.mxu0 0.0
    %1279 = vmatprep.subr.mxu0 0.0
    %1280 = vmatpush2.msra.mxu0 0.0
    %1281 = vmatprep.subr.mxu0 0.0
    %1282 = vmatpush2.msra.mxu0 0.0
    %1283 = vmatprep.subr.mxu0 0.0
    %1284 = vmatpush2.msra.mxu0 0.0
    %1285 = vmatprep.subr.mxu0 0.0
    %1286 = vmatpush2.msra.mxu0 0.0
    %1287 = vmatprep.subr.mxu0 0.0
    %1288 = vmatpush2.msra.mxu0 0.0
    %1289 = vmatprep.mubr.f32.mxu0 0.0
    %1290 = vmatmul.mubr.f32.gmra.mxu0 %v1103
    %v1291 = vpop.f32.mrf.mxu0
    %v1292 = vadd.f32 0.0, %v1291
    %v1293 = vpop.f32.mrf.mxu0
    %1294 = vdwg.mxu0
    %s1295 = scalar_lea.vmem [#allocation3], 18
    %v1296 = vld [vmem:[%s1295] sm:$0x3f]
    %v1299 = vcombine.low %v1221, %v1223
    %v1301 = vunpack.c.l.s4 1983009808
    %v1302 = vunpack.c.0.s8 %v1301
    %v1303 = vlaneseq
    %v1304 = vshrl.u32 %v1303, 7
    %v1305 = vsub.s32 %v1302, %v1304
    %v1306 = vrot.slane %v1299, %v1305
    %v1308 = vadd.f32 %v1296, %v1306
    %v1309 = vxor.u32 %v1308, 2147483648
    %v1310 = vmul.f32 %v1309, 1.442695
    %v1311 = vpow.pop %v1310
    %v1312 = vadd.f32 %v1311, 1.0
    %v1313 = vrcp.pop %v1312
    %v1314 = vmul.f32 1.0, %v1313
    %v1315 = vadd.f32 %v1292, %v642
    %v1316 = vmul.f32 %v1314, %v1315
    %v1318 = vrot.slane %v1296, 4
    %v1320 = vadd.f32 %v1318, %v1316
    %v1321 = vtanh.pop %v1320
    %v1322 = vsub.f32 %v1103, %v1321
    %v1324 = vrot.slane %v1314, 2
    %v1326 = vmul.f32 %v1324, %v1322
    %v1327 = vadd.f32 %v1321, %v1326
    %s1328 = scalar_lea.vmem [#allocation10], 6
    %1329 = vst [vmem:[%s1328] sm:$0x3] %v1327
    %v1330 = vld [vmem:[#allocation9] sm:$0xff]
    %v1331 = vld [vmem:[#allocation9 + $0x8] sm:$0xff]
    %v1332 = vld [vmem:[#allocation9 + $0x10] sm:$0xff]
    %v1333 = vld [vmem:[#allocation9 + $0x18] sm:$0xff]
    %v1334 = vld [vmem:[#allocation9 + $0x20] sm:$0xff]
    %v1335 = vld [vmem:[#allocation9 + $0x28] sm:$0xff]
    %v1336 = vld [vmem:[#allocation9 + $0x30] sm:$0xff]
    %v1337 = vld [vmem:[#allocation9 + $0x38] sm:$0xff]
    %v1338 = vld [vmem:[#allocation9 + $0x40] sm:$0xff]
    %v1339 = vld [vmem:[#allocation9 + $0x48] sm:$0xff]
    %v1340 = vld [vmem:[#allocation9 + $0x50] sm:$0xff]
    %v1341 = vld [vmem:[#allocation9 + $0x58] sm:$0xff]
    %v1342 = vld [vmem:[#allocation9 + $0x60] sm:$0xff]
    %v1343 = vld [vmem:[#allocation9 + $0x68] sm:$0xff]
    %v1344 = vld [vmem:[#allocation9 + $0x70] sm:$0xff]
    %v1345 = vld [vmem:[#allocation9 + $0x78] sm:$0xff]
    %v1346 = vld [vmem:[#allocation9 + $0x80] sm:$0xff]
    %v1347 = vld [vmem:[#allocation9 + $0x88] sm:$0xff]
    %v1348 = vld [vmem:[#allocation9 + $0x90] sm:$0xff]
    %v1349 = vld [vmem:[#allocation9 + $0x98] sm:$0xff]
    %v1350 = vld [vmem:[#allocation9 + $0xa0] sm:$0xff]
    %v1351 = vld [vmem:[#allocation9 + $0xa8] sm:$0xff]
    %v1352 = vld [vmem:[#allocation9 + $0xb0] sm:$0xff]
    %v1353 = vld [vmem:[#allocation9 + $0xb8] sm:$0xff]
    %v1354 = vld [vmem:[#allocation9 + $0xc0] sm:$0xff]
    %v1355 = vld [vmem:[#allocation9 + $0xc8] sm:$0xff]
    %v1356 = vld [vmem:[#allocation9 + $0xd0] sm:$0xff]
    %v1357 = vld [vmem:[#allocation9 + $0xd8] sm:$0xff]
    %v1358 = vld [vmem:[#allocation9 + $0xe0] sm:$0xff]
    %v1359 = vld [vmem:[#allocation9 + $0xe8] sm:$0xff]
    %v1360 = vld [vmem:[#allocation9 + $0xf0] sm:$0xff]
    %v1361 = vld [vmem:[#allocation9 + $0xf8] sm:$0xff]
    %v1362 = vld [vmem:[#allocation9 + $0x100] sm:$0xff]
    %v1363 = vld [vmem:[#allocation9 + $0x108] sm:$0xff]
    %v1364 = vld [vmem:[#allocation9 + $0x110] sm:$0xff]
    %v1365 = vld [vmem:[#allocation9 + $0x118] sm:$0xff]
    %v1366 = vld [vmem:[#allocation9 + $0x120] sm:$0xff]
    %v1367 = vld [vmem:[#allocation9 + $0x128] sm:$0xff]
    %v1368 = vld [vmem:[#allocation9 + $0x130] sm:$0xff]
    %v1369 = vld [vmem:[#allocation9 + $0x138] sm:$0xff]
    %v1370 = vld [vmem:[#allocation9 + $0x140] sm:$0xff]
    %v1371 = vld [vmem:[#allocation9 + $0x148] sm:$0xff]
    %v1372 = vld [vmem:[#allocation9 + $0x150] sm:$0xff]
    %v1373 = vld [vmem:[#allocation9 + $0x158] sm:$0xff]
    %v1374 = vld [vmem:[#allocation9 + $0x160] sm:$0xff]
    %v1375 = vld [vmem:[#allocation9 + $0x168] sm:$0xff]
    %v1376 = vld [vmem:[#allocation9 + $0x170] sm:$0xff]
    %v1377 = vld [vmem:[#allocation9 + $0x178] sm:$0xff]
    %1378 = vmatprep.subr.mxu0 %v1376
    %1379 = vmatpush1.msra.mxu0 %v1375
    %1380 = vmatprep.subr.mxu0 %v1373
    %1381 = vmatpush1.msra.mxu0 %v1372
    %1382 = vmatprep.subr.mxu0 %v1370
    %1383 = vmatpush1.msra.mxu0 %v1369
    %1384 = vmatprep.subr.mxu0 %v1367
    %1385 = vmatpush1.msra.mxu0 %v1366
    %1386 = vmatprep.subr.mxu0 %v1364
    %1387 = vmatpush1.msra.mxu0 %v1363
    %1388 = vmatprep.subr.mxu0 %v1361
    %1389 = vmatpush1.msra.mxu0 %v1360
    %1390 = vmatprep.subr.mxu0 %v1358
    %1391 = vmatpush1.msra.mxu0 %v1357
    %1392 = vmatprep.subr.mxu0 %v1355
    %1393 = vmatpush1.msra.mxu0 %v1354
    %1394 = vmatprep.subr.mxu0 %v1352
    %1395 = vmatpush1.msra.mxu0 %v1351
    %1396 = vmatprep.subr.mxu0 %v1349
    %1397 = vmatpush1.msra.mxu0 %v1348
    %1398 = vmatprep.subr.mxu0 %v1346
    %1399 = vmatpush1.msra.mxu0 %v1345
    %1400 = vmatprep.subr.mxu0 %v1343
    %1401 = vmatpush1.msra.mxu0 %v1342
    %1402 = vmatprep.subr.mxu0 %v1340
    %1403 = vmatpush1.msra.mxu0 %v1339
    %1404 = vmatprep.subr.mxu0 %v1337
    %1405 = vmatpush1.msra.mxu0 %v1336
    %1406 = vmatprep.subr.mxu0 %v1334
    %1407 = vmatpush1.msra.mxu0 %v1333
    %1408 = vmatprep.subr.mxu0 %v1331
    %1409 = vmatpush1.msra.mxu0 %v1330
    %1410 = vmatprep.subr.mxu0 0.0
    %1411 = vmatpush2.msra.mxu0 0.0
    %1412 = vmatprep.subr.mxu0 0.0
    %1413 = vmatpush2.msra.mxu0 0.0
    %1414 = vmatprep.subr.mxu0 0.0
    %1415 = vmatpush2.msra.mxu0 0.0
    %1416 = vmatprep.subr.mxu0 0.0
    %1417 = vmatpush2.msra.mxu0 0.0
    %1418 = vmatprep.subr.mxu0 0.0
    %1419 = vmatpush2.msra.mxu0 0.0
    %1420 = vmatprep.subr.mxu0 0.0
    %1421 = vmatpush2.msra.mxu0 0.0
    %1422 = vmatprep.subr.mxu0 0.0
    %1423 = vmatpush2.msra.mxu0 0.0
    %1424 = vmatprep.subr.mxu0 0.0
    %1425 = vmatpush2.msra.mxu0 0.0
    %1426 = vmatprep.subr.mxu0 0.0
    %1427 = vmatpush2.msra.mxu0 0.0
    %1428 = vmatprep.subr.mxu0 0.0
    %1429 = vmatpush2.msra.mxu0 0.0
    %1430 = vmatprep.subr.mxu0 0.0
    %1431 = vmatpush2.msra.mxu0 0.0
    %1432 = vmatprep.subr.mxu0 0.0
    %1433 = vmatpush2.msra.mxu0 0.0
    %1434 = vmatprep.subr.mxu0 0.0
    %1435 = vmatpush2.msra.mxu0 0.0
    %1436 = vmatprep.subr.mxu0 0.0
    %1437 = vmatpush2.msra.mxu0 0.0
    %1438 = vmatprep.subr.mxu0 0.0
    %1439 = vmatpush2.msra.mxu0 0.0
    %1440 = vmatprep.subr.mxu0 0.0
    %1441 = vmatpush2.msra.mxu0 0.0
    %1442 = vmatprep.mubr.f32.mxu0 0.0
    %1443 = vmatmul.mubr.f32.gmra.mxu0 %v1327
    %v1444 = vpop.f32.mrf.mxu0
    %v1445 = vadd.f32 0.0, %v1444
    %v1446 = vpop.f32.mrf.mxu0
    %v1447 = vadd.f32 0.0, %v1446
    %1448 = vdwg.mxu0
    %1449 = vmatprep.subr.mxu0 0.0
    %1450 = vmatpush1.msra.mxu0 %v1377
    %1451 = vmatprep.subr.mxu0 0.0
    %1452 = vmatpush1.msra.mxu0 %v1374
    %1453 = vmatprep.subr.mxu0 0.0
    %1454 = vmatpush1.msra.mxu0 %v1371
    %1455 = vmatprep.subr.mxu0 0.0
    %1456 = vmatpush1.msra.mxu0 %v1368
    %1457 = vmatprep.subr.mxu0 0.0
    %1458 = vmatpush1.msra.mxu0 %v1365
    %1459 = vmatprep.subr.mxu0 0.0
    %1460 = vmatpush1.msra.mxu0 %v1362
    %1461 = vmatprep.subr.mxu0 0.0
    %1462 = vmatpush1.msra.mxu0 %v1359
    %1463 = vmatprep.subr.mxu0 0.0
    %1464 = vmatpush1.msra.mxu0 %v1356
    %1465 = vmatprep.subr.mxu0 0.0
    %1466 = vmatpush1.msra.mxu0 %v1353
    %1467 = vmatprep.subr.mxu0 0.0
    %1468 = vmatpush1.msra.mxu0 %v1350
    %1469 = vmatprep.subr.mxu0 0.0
    %1470 = vmatpush1.msra.mxu0 %v1347
    %1471 = vmatprep.subr.mxu0 0.0
    %1472 = vmatpush1.msra.mxu0 %v1344
    %1473 = vmatprep.subr.mxu0 0.0
    %1474 = vmatpush1.msra.mxu0 %v1341
    %1475 = vmatprep.subr.mxu0 0.0
    %1476 = vmatpush1.msra.mxu0 %v1338
    %1477 = vmatprep.subr.mxu0 0.0
    %1478 = vmatpush1.msra.mxu0 %v1335
    %1479 = vmatprep.subr.mxu0 0.0
    %1480 = vmatpush1.msra.mxu0 %v1332
    %1481 = vmatprep.subr.mxu0 0.0
    %1482 = vmatpush2.msra.mxu0 0.0
    %1483 = vmatprep.subr.mxu0 0.0
    %1484 = vmatpush2.msra.mxu0 0.0
    %1485 = vmatprep.subr.mxu0 0.0
    %1486 = vmatpush2.msra.mxu0 0.0
    %1487 = vmatprep.subr.mxu0 0.0
    %1488 = vmatpush2.msra.mxu0 0.0
    %1489 = vmatprep.subr.mxu0 0.0
    %1490 = vmatpush2.msra.mxu0 0.0
    %1491 = vmatprep.subr.mxu0 0.0
    %1492 = vmatpush2.msra.mxu0 0.0
    %1493 = vmatprep.subr.mxu0 0.0
    %1494 = vmatpush2.msra.mxu0 0.0
    %1495 = vmatprep.subr.mxu0 0.0
    %1496 = vmatpush2.msra.mxu0 0.0
    %1497 = vmatprep.subr.mxu0 0.0
    %1498 = vmatpush2.msra.mxu0 0.0
    %1499 = vmatprep.subr.mxu0 0.0
    %1500 = vmatpush2.msra.mxu0 0.0
    %1501 = vmatprep.subr.mxu0 0.0
    %1502 = vmatpush2.msra.mxu0 0.0
    %1503 = vmatprep.subr.mxu0 0.0
    %1504 = vmatpush2.msra.mxu0 0.0
    %1505 = vmatprep.subr.mxu0 0.0
    %1506 = vmatpush2.msra.mxu0 0.0
    %1507 = vmatprep.subr.mxu0 0.0
    %1508 = vmatpush2.msra.mxu0 0.0
    %1509 = vmatprep.subr.mxu0 0.0
    %1510 = vmatpush2.msra.mxu0 0.0
    %1511 = vmatprep.subr.mxu0 0.0
    %1512 = vmatpush2.msra.mxu0 0.0
    %1513 = vmatprep.mubr.f32.mxu0 0.0
    %1514 = vmatmul.mubr.f32.gmra.mxu0 %v1327
    %v1515 = vpop.f32.mrf.mxu0
    %v1516 = vadd.f32 0.0, %v1515
    %v1517 = vpop.f32.mrf.mxu0
    %1518 = vdwg.mxu0
    %s1519 = scalar_lea.vmem [#allocation3], 24
    %v1520 = vld [vmem:[%s1519] sm:$0x3f]
    %v1523 = vcombine.low %v1445, %v1447
    %v1525 = vunpack.c.l.s4 1983009808
    %v1526 = vunpack.c.0.s8 %v1525
    %v1527 = vlaneseq
    %v1528 = vshrl.u32 %v1527, 7
    %v1529 = vsub.s32 %v1526, %v1528
    %v1530 = vrot.slane %v1523, %v1529
    %v1532 = vadd.f32 %v1520, %v1530
    %v1533 = vxor.u32 %v1532, 2147483648
    %v1534 = vmul.f32 %v1533, 1.442695
    %v1535 = vpow.pop %v1534
    %v1536 = vadd.f32 %v1535, 1.0
    %v1537 = vrcp.pop %v1536
    %v1538 = vmul.f32 1.0, %v1537
    %v1539 = vadd.f32 %v1516, %v642
    %v1540 = vmul.f32 %v1538, %v1539
    %v1542 = vrot.slane %v1520, 4
    %v1544 = vadd.f32 %v1542, %v1540
    %v1545 = vtanh.pop %v1544
    %v1546 = vsub.f32 %v1327, %v1545
    %v1548 = vrot.slane %v1538, 2
    %v1550 = vmul.f32 %v1548, %v1546
    %v1551 = vadd.f32 %v1545, %v1550
    %s1552 = scalar_lea.vmem [#allocation10], 8
    %1553 = vst [vmem:[%s1552] sm:$0x3] %v1551
    %v1554 = vld [vmem:[#allocation9] sm:$0xff]
    %v1555 = vld [vmem:[#allocation9 + $0x8] sm:$0xff]
    %v1556 = vld [vmem:[#allocation9 + $0x10] sm:$0xff]
    %v1557 = vld [vmem:[#allocation9 + $0x18] sm:$0xff]
    %v1558 = vld [vmem:[#allocation9 + $0x20] sm:$0xff]
    %v1559 = vld [vmem:[#allocation9 + $0x28] sm:$0xff]
    %v1560 = vld [vmem:[#allocation9 + $0x30] sm:$0xff]
    %v1561 = vld [vmem:[#allocation9 + $0x38] sm:$0xff]
    %v1562 = vld [vmem:[#allocation9 + $0x40] sm:$0xff]
    %v1563 = vld [vmem:[#allocation9 + $0x48] sm:$0xff]
    %v1564 = vld [vmem:[#allocation9 + $0x50] sm:$0xff]
    %v1565 = vld [vmem:[#allocation9 + $0x58] sm:$0xff]
    %v1566 = vld [vmem:[#allocation9 + $0x60] sm:$0xff]
    %v1567 = vld [vmem:[#allocation9 + $0x68] sm:$0xff]
    %v1568 = vld [vmem:[#allocation9 + $0x70] sm:$0xff]
    %v1569 = vld [vmem:[#allocation9 + $0x78] sm:$0xff]
    %v1570 = vld [vmem:[#allocation9 + $0x80] sm:$0xff]
    %v1571 = vld [vmem:[#allocation9 + $0x88] sm:$0xff]
    %v1572 = vld [vmem:[#allocation9 + $0x90] sm:$0xff]
    %v1573 = vld [vmem:[#allocation9 + $0x98] sm:$0xff]
    %v1574 = vld [vmem:[#allocation9 + $0xa0] sm:$0xff]
    %v1575 = vld [vmem:[#allocation9 + $0xa8] sm:$0xff]
    %v1576 = vld [vmem:[#allocation9 + $0xb0] sm:$0xff]
    %v1577 = vld [vmem:[#allocation9 + $0xb8] sm:$0xff]
    %v1578 = vld [vmem:[#allocation9 + $0xc0] sm:$0xff]
    %v1579 = vld [vmem:[#allocation9 + $0xc8] sm:$0xff]
    %v1580 = vld [vmem:[#allocation9 + $0xd0] sm:$0xff]
    %v1581 = vld [vmem:[#allocation9 + $0xd8] sm:$0xff]
    %v1582 = vld [vmem:[#allocation9 + $0xe0] sm:$0xff]
    %v1583 = vld [vmem:[#allocation9 + $0xe8] sm:$0xff]
    %v1584 = vld [vmem:[#allocation9 + $0xf0] sm:$0xff]
    %v1585 = vld [vmem:[#allocation9 + $0xf8] sm:$0xff]
    %v1586 = vld [vmem:[#allocation9 + $0x100] sm:$0xff]
    %v1587 = vld [vmem:[#allocation9 + $0x108] sm:$0xff]
    %v1588 = vld [vmem:[#allocation9 + $0x110] sm:$0xff]
    %v1589 = vld [vmem:[#allocation9 + $0x118] sm:$0xff]
    %v1590 = vld [vmem:[#allocation9 + $0x120] sm:$0xff]
    %v1591 = vld [vmem:[#allocation9 + $0x128] sm:$0xff]
    %v1592 = vld [vmem:[#allocation9 + $0x130] sm:$0xff]
    %v1593 = vld [vmem:[#allocation9 + $0x138] sm:$0xff]
    %v1594 = vld [vmem:[#allocation9 + $0x140] sm:$0xff]
    %v1595 = vld [vmem:[#allocation9 + $0x148] sm:$0xff]
    %v1596 = vld [vmem:[#allocation9 + $0x150] sm:$0xff]
    %v1597 = vld [vmem:[#allocation9 + $0x158] sm:$0xff]
    %v1598 = vld [vmem:[#allocation9 + $0x160] sm:$0xff]
    %v1599 = vld [vmem:[#allocation9 + $0x168] sm:$0xff]
    %v1600 = vld [vmem:[#allocation9 + $0x170] sm:$0xff]
    %v1601 = vld [vmem:[#allocation9 + $0x178] sm:$0xff]
    %1602 = vmatprep.subr.mxu0 %v1600
    %1603 = vmatpush1.msra.mxu0 %v1599
    %1604 = vmatprep.subr.mxu0 %v1597
    %1605 = vmatpush1.msra.mxu0 %v1596
    %1606 = vmatprep.subr.mxu0 %v1594
    %1607 = vmatpush1.msra.mxu0 %v1593
    %1608 = vmatprep.subr.mxu0 %v1591
    %1609 = vmatpush1.msra.mxu0 %v1590
    %1610 = vmatprep.subr.mxu0 %v1588
    %1611 = vmatpush1.msra.mxu0 %v1587
    %1612 = vmatprep.subr.mxu0 %v1585
    %1613 = vmatpush1.msra.mxu0 %v1584
    %1614 = vmatprep.subr.mxu0 %v1582
    %1615 = vmatpush1.msra.mxu0 %v1581
    %1616 = vmatprep.subr.mxu0 %v1579
    %1617 = vmatpush1.msra.mxu0 %v1578
    %1618 = vmatprep.subr.mxu0 %v1576
    %1619 = vmatpush1.msra.mxu0 %v1575
    %1620 = vmatprep.subr.mxu0 %v1573
    %1621 = vmatpush1.msra.mxu0 %v1572
    %1622 = vmatprep.subr.mxu0 %v1570
    %1623 = vmatpush1.msra.mxu0 %v1569
    %1624 = vmatprep.subr.mxu0 %v1567
    %1625 = vmatpush1.msra.mxu0 %v1566
    %1626 = vmatprep.subr.mxu0 %v1564
    %1627 = vmatpush1.msra.mxu0 %v1563
    %1628 = vmatprep.subr.mxu0 %v1561
    %1629 = vmatpush1.msra.mxu0 %v1560
    %1630 = vmatprep.subr.mxu0 %v1558
    %1631 = vmatpush1.msra.mxu0 %v1557
    %1632 = vmatprep.subr.mxu0 %v1555
    %1633 = vmatpush1.msra.mxu0 %v1554
    %1634 = vmatprep.subr.mxu0 0.0
    %1635 = vmatpush2.msra.mxu0 0.0
    %1636 = vmatprep.subr.mxu0 0.0
    %1637 = vmatpush2.msra.mxu0 0.0
    %1638 = vmatprep.subr.mxu0 0.0
    %1639 = vmatpush2.msra.mxu0 0.0
    %1640 = vmatprep.subr.mxu0 0.0
    %1641 = vmatpush2.msra.mxu0 0.0
    %1642 = vmatprep.subr.mxu0 0.0
    %1643 = vmatpush2.msra.mxu0 0.0
    %1644 = vmatprep.subr.mxu0 0.0
    %1645 = vmatpush2.msra.mxu0 0.0
    %1646 = vmatprep.subr.mxu0 0.0
    %1647 = vmatpush2.msra.mxu0 0.0
    %1648 = vmatprep.subr.mxu0 0.0
    %1649 = vmatpush2.msra.mxu0 0.0
    %1650 = vmatprep.subr.mxu0 0.0
    %1651 = vmatpush2.msra.mxu0 0.0
    %1652 = vmatprep.subr.mxu0 0.0
    %1653 = vmatpush2.msra.mxu0 0.0
    %1654 = vmatprep.subr.mxu0 0.0
    %1655 = vmatpush2.msra.mxu0 0.0
    %1656 = vmatprep.subr.mxu0 0.0
    %1657 = vmatpush2.msra.mxu0 0.0
    %1658 = vmatprep.subr.mxu0 0.0
    %1659 = vmatpush2.msra.mxu0 0.0
    %1660 = vmatprep.subr.mxu0 0.0
    %1661 = vmatpush2.msra.mxu0 0.0
    %1662 = vmatprep.subr.mxu0 0.0
    %1663 = vmatpush2.msra.mxu0 0.0
    %1664 = vmatprep.subr.mxu0 0.0
    %1665 = vmatpush2.msra.mxu0 0.0
    %1666 = vmatprep.mubr.f32.mxu0 0.0
    %1667 = vmatmul.mubr.f32.gmra.mxu0 %v1551
    %v1668 = vpop.f32.mrf.mxu0
    %v1669 = vadd.f32 0.0, %v1668
    %v1670 = vpop.f32.mrf.mxu0
    %v1671 = vadd.f32 0.0, %v1670
    %1672 = vdwg.mxu0
    %1673 = vmatprep.subr.mxu0 0.0
    %1674 = vmatpush1.msra.mxu0 %v1601
    %1675 = vmatprep.subr.mxu0 0.0
    %1676 = vmatpush1.msra.mxu0 %v1598
    %1677 = vmatprep.subr.mxu0 0.0
    %1678 = vmatpush1.msra.mxu0 %v1595
    %1679 = vmatprep.subr.mxu0 0.0
    %1680 = vmatpush1.msra.mxu0 %v1592
    %1681 = vmatprep.subr.mxu0 0.0
    %1682 = vmatpush1.msra.mxu0 %v1589
    %1683 = vmatprep.subr.mxu0 0.0
    %1684 = vmatpush1.msra.mxu0 %v1586
    %1685 = vmatprep.subr.mxu0 0.0
    %1686 = vmatpush1.msra.mxu0 %v1583
    %1687 = vmatprep.subr.mxu0 0.0
    %1688 = vmatpush1.msra.mxu0 %v1580
    %1689 = vmatprep.subr.mxu0 0.0
    %1690 = vmatpush1.msra.mxu0 %v1577
    %1691 = vmatprep.subr.mxu0 0.0
    %1692 = vmatpush1.msra.mxu0 %v1574
    %1693 = vmatprep.subr.mxu0 0.0
    %1694 = vmatpush1.msra.mxu0 %v1571
    %1695 = vmatprep.subr.mxu0 0.0
    %1696 = vmatpush1.msra.mxu0 %v1568
    %1697 = vmatprep.subr.mxu0 0.0
    %1698 = vmatpush1.msra.mxu0 %v1565
    %1699 = vmatprep.subr.mxu0 0.0
    %1700 = vmatpush1.msra.mxu0 %v1562
    %1701 = vmatprep.subr.mxu0 0.0
    %1702 = vmatpush1.msra.mxu0 %v1559
    %1703 = vmatprep.subr.mxu0 0.0
    %1704 = vmatpush1.msra.mxu0 %v1556
    %1705 = vmatprep.subr.mxu0 0.0
    %1706 = vmatpush2.msra.mxu0 0.0
    %1707 = vmatprep.subr.mxu0 0.0
    %1708 = vmatpush2.msra.mxu0 0.0
    %1709 = vmatprep.subr.mxu0 0.0
    %1710 = vmatpush2.msra.mxu0 0.0
    %1711 = vmatprep.subr.mxu0 0.0
    %1712 = vmatpush2.msra.mxu0 0.0
    %1713 = vmatprep.subr.mxu0 0.0
    %1714 = vmatpush2.msra.mxu0 0.0
    %1715 = vmatprep.subr.mxu0 0.0
    %1716 = vmatpush2.msra.mxu0 0.0
    %1717 = vmatprep.subr.mxu0 0.0
    %1718 = vmatpush2.msra.mxu0 0.0
    %1719 = vmatprep.subr.mxu0 0.0
    %1720 = vmatpush2.msra.mxu0 0.0
    %1721 = vmatprep.subr.mxu0 0.0
    %1722 = vmatpush2.msra.mxu0 0.0
    %1723 = vmatprep.subr.mxu0 0.0
    %1724 = vmatpush2.msra.mxu0 0.0
    %1725 = vmatprep.subr.mxu0 0.0
    %1726 = vmatpush2.msra.mxu0 0.0
    %1727 = vmatprep.subr.mxu0 0.0
    %1728 = vmatpush2.msra.mxu0 0.0
    %1729 = vmatprep.subr.mxu0 0.0
    %1730 = vmatpush2.msra.mxu0 0.0
    %1731 = vmatprep.subr.mxu0 0.0
    %1732 = vmatpush2.msra.mxu0 0.0
    %1733 = vmatprep.subr.mxu0 0.0
    %1734 = vmatpush2.msra.mxu0 0.0
    %1735 = vmatprep.subr.mxu0 0.0
    %1736 = vmatpush2.msra.mxu0 0.0
    %1737 = vmatprep.mubr.f32.mxu0 0.0
    %1738 = vmatmul.mubr.f32.gmra.mxu0 %v1551
    %v1739 = vpop.f32.mrf.mxu0
    %v1740 = vadd.f32 0.0, %v1739
    %v1741 = vpop.f32.mrf.mxu0
    %1742 = vdwg.mxu0
    %s1743 = scalar_lea.vmem [#allocation3], 30
    %v1744 = vld [vmem:[%s1743] sm:$0x3f]
    %v1747 = vcombine.low %v1669, %v1671
    %v1749 = vunpack.c.l.s4 1983009808
    %v1750 = vunpack.c.0.s8 %v1749
    %v1751 = vlaneseq
    %v1752 = vshrl.u32 %v1751, 7
    %v1753 = vsub.s32 %v1750, %v1752
    %v1754 = vrot.slane %v1747, %v1753
    %v1756 = vadd.f32 %v1744, %v1754
    %v1757 = vxor.u32 %v1756, 2147483648
    %v1758 = vmul.f32 %v1757, 1.442695
    %v1759 = vpow.pop %v1758
    %v1760 = vadd.f32 %v1759, 1.0
    %v1761 = vrcp.pop %v1760
    %v1762 = vmul.f32 1.0, %v1761
    %v1763 = vadd.f32 %v1740, %v642
    %v1764 = vmul.f32 %v1762, %v1763
    %v1766 = vrot.slane %v1744, 4
    %v1768 = vadd.f32 %v1766, %v1764
    %v1769 = vtanh.pop %v1768
    %v1770 = vsub.f32 %v1551, %v1769
    %v1772 = vrot.slane %v1762, 2
    %v1774 = vmul.f32 %v1772, %v1770
    %v1775 = vadd.f32 %v1769, %v1774
    %s1776 = scalar_lea.vmem [#allocation10], 10
    %1777 = vst [vmem:[%s1776] sm:$0x3] %v1775
    %v1778 = vld [vmem:[#allocation9] sm:$0xff]
    %v1779 = vld [vmem:[#allocation9 + $0x8] sm:$0xff]
    %v1780 = vld [vmem:[#allocation9 + $0x10] sm:$0xff]
    %v1781 = vld [vmem:[#allocation9 + $0x18] sm:$0xff]
    %v1782 = vld [vmem:[#allocation9 + $0x20] sm:$0xff]
    %v1783 = vld [vmem:[#allocation9 + $0x28] sm:$0xff]
    %v1784 = vld [vmem:[#allocation9 + $0x30] sm:$0xff]
    %v1785 = vld [vmem:[#allocation9 + $0x38] sm:$0xff]
    %v1786 = vld [vmem:[#allocation9 + $0x40] sm:$0xff]
    %v1787 = vld [vmem:[#allocation9 + $0x48] sm:$0xff]
    %v1788 = vld [vmem:[#allocation9 + $0x50] sm:$0xff]
    %v1789 = vld [vmem:[#allocation9 + $0x58] sm:$0xff]
    %v1790 = vld [vmem:[#allocation9 + $0x60] sm:$0xff]
    %v1791 = vld [vmem:[#allocation9 + $0x68] sm:$0xff]
    %v1792 = vld [vmem:[#allocation9 + $0x70] sm:$0xff]
    %v1793 = vld [vmem:[#allocation9 + $0x78] sm:$0xff]
    %v1794 = vld [vmem:[#allocation9 + $0x80] sm:$0xff]
    %v1795 = vld [vmem:[#allocation9 + $0x88] sm:$0xff]
    %v1796 = vld [vmem:[#allocation9 + $0x90] sm:$0xff]
    %v1797 = vld [vmem:[#allocation9 + $0x98] sm:$0xff]
    %v1798 = vld [vmem:[#allocation9 + $0xa0] sm:$0xff]
    %v1799 = vld [vmem:[#allocation9 + $0xa8] sm:$0xff]
    %v1800 = vld [vmem:[#allocation9 + $0xb0] sm:$0xff]
    %v1801 = vld [vmem:[#allocation9 + $0xb8] sm:$0xff]
    %v1802 = vld [vmem:[#allocation9 + $0xc0] sm:$0xff]
    %v1803 = vld [vmem:[#allocation9 + $0xc8] sm:$0xff]
    %v1804 = vld [vmem:[#allocation9 + $0xd0] sm:$0xff]
    %v1805 = vld [vmem:[#allocation9 + $0xd8] sm:$0xff]
    %v1806 = vld [vmem:[#allocation9 + $0xe0] sm:$0xff]
    %v1807 = vld [vmem:[#allocation9 + $0xe8] sm:$0xff]
    %v1808 = vld [vmem:[#allocation9 + $0xf0] sm:$0xff]
    %v1809 = vld [vmem:[#allocation9 + $0xf8] sm:$0xff]
    %v1810 = vld [vmem:[#allocation9 + $0x100] sm:$0xff]
    %v1811 = vld [vmem:[#allocation9 + $0x108] sm:$0xff]
    %v1812 = vld [vmem:[#allocation9 + $0x110] sm:$0xff]
    %v1813 = vld [vmem:[#allocation9 + $0x118] sm:$0xff]
    %v1814 = vld [vmem:[#allocation9 + $0x120] sm:$0xff]
    %v1815 = vld [vmem:[#allocation9 + $0x128] sm:$0xff]
    %v1816 = vld [vmem:[#allocation9 + $0x130] sm:$0xff]
    %v1817 = vld [vmem:[#allocation9 + $0x138] sm:$0xff]
    %v1818 = vld [vmem:[#allocation9 + $0x140] sm:$0xff]
    %v1819 = vld [vmem:[#allocation9 + $0x148] sm:$0xff]
    %v1820 = vld [vmem:[#allocation9 + $0x150] sm:$0xff]
    %v1821 = vld [vmem:[#allocation9 + $0x158] sm:$0xff]
    %v1822 = vld [vmem:[#allocation9 + $0x160] sm:$0xff]
    %v1823 = vld [vmem:[#allocation9 + $0x168] sm:$0xff]
    %v1824 = vld [vmem:[#allocation9 + $0x170] sm:$0xff]
    %v1825 = vld [vmem:[#allocation9 + $0x178] sm:$0xff]
    %1826 = vmatprep.subr.mxu0 %v1824
    %1827 = vmatpush1.msra.mxu0 %v1823
    %1828 = vmatprep.subr.mxu0 %v1821
    %1829 = vmatpush1.msra.mxu0 %v1820
    %1830 = vmatprep.subr.mxu0 %v1818
    %1831 = vmatpush1.msra.mxu0 %v1817
    %1832 = vmatprep.subr.mxu0 %v1815
    %1833 = vmatpush1.msra.mxu0 %v1814
    %1834 = vmatprep.subr.mxu0 %v1812
    %1835 = vmatpush1.msra.mxu0 %v1811
    %1836 = vmatprep.subr.mxu0 %v1809
    %1837 = vmatpush1.msra.mxu0 %v1808
    %1838 = vmatprep.subr.mxu0 %v1806
    %1839 = vmatpush1.msra.mxu0 %v1805
    %1840 = vmatprep.subr.mxu0 %v1803
    %1841 = vmatpush1.msra.mxu0 %v1802
    %1842 = vmatprep.subr.mxu0 %v1800
    %1843 = vmatpush1.msra.mxu0 %v1799
    %1844 = vmatprep.subr.mxu0 %v1797
    %1845 = vmatpush1.msra.mxu0 %v1796
    %1846 = vmatprep.subr.mxu0 %v1794
    %1847 = vmatpush1.msra.mxu0 %v1793
    %1848 = vmatprep.subr.mxu0 %v1791
    %1849 = vmatpush1.msra.mxu0 %v1790
    %1850 = vmatprep.subr.mxu0 %v1788
    %1851 = vmatpush1.msra.mxu0 %v1787
    %1852 = vmatprep.subr.mxu0 %v1785
    %1853 = vmatpush1.msra.mxu0 %v1784
    %1854 = vmatprep.subr.mxu0 %v1782
    %1855 = vmatpush1.msra.mxu0 %v1781
    %1856 = vmatprep.subr.mxu0 %v1779
    %1857 = vmatpush1.msra.mxu0 %v1778
    %1858 = vmatprep.subr.mxu0 0.0
    %1859 = vmatpush2.msra.mxu0 0.0
    %1860 = vmatprep.subr.mxu0 0.0
    %1861 = vmatpush2.msra.mxu0 0.0
    %1862 = vmatprep.subr.mxu0 0.0
    %1863 = vmatpush2.msra.mxu0 0.0
    %1864 = vmatprep.subr.mxu0 0.0
    %1865 = vmatpush2.msra.mxu0 0.0
    %1866 = vmatprep.subr.mxu0 0.0
    %1867 = vmatpush2.msra.mxu0 0.0
    %1868 = vmatprep.subr.mxu0 0.0
    %1869 = vmatpush2.msra.mxu0 0.0
    %1870 = vmatprep.subr.mxu0 0.0
    %1871 = vmatpush2.msra.mxu0 0.0
    %1872 = vmatprep.subr.mxu0 0.0
    %1873 = vmatpush2.msra.mxu0 0.0
    %1874 = vmatprep.subr.mxu0 0.0
    %1875 = vmatpush2.msra.mxu0 0.0
    %1876 = vmatprep.subr.mxu0 0.0
    %1877 = vmatpush2.msra.mxu0 0.0
    %1878 = vmatprep.subr.mxu0 0.0
    %1879 = vmatpush2.msra.mxu0 0.0
    %1880 = vmatprep.subr.mxu0 0.0
    %1881 = vmatpush2.msra.mxu0 0.0
    %1882 = vmatprep.subr.mxu0 0.0
    %1883 = vmatpush2.msra.mxu0 0.0
    %1884 = vmatprep.subr.mxu0 0.0
    %1885 = vmatpush2.msra.mxu0 0.0
    %1886 = vmatprep.subr.mxu0 0.0
    %1887 = vmatpush2.msra.mxu0 0.0
    %1888 = vmatprep.subr.mxu0 0.0
    %1889 = vmatpush2.msra.mxu0 0.0
    %1890 = vmatprep.mubr.f32.mxu0 0.0
    %1891 = vmatmul.mubr.f32.gmra.mxu0 %v1775
    %v1892 = vpop.f32.mrf.mxu0
    %v1893 = vadd.f32 0.0, %v1892
    %v1894 = vpop.f32.mrf.mxu0
    %v1895 = vadd.f32 0.0, %v1894
    %1896 = vdwg.mxu0
    %1897 = vmatprep.subr.mxu0 0.0
    %1898 = vmatpush1.msra.mxu0 %v1825
    %1899 = vmatprep.subr.mxu0 0.0
    %1900 = vmatpush1.msra.mxu0 %v1822
    %1901 = vmatprep.subr.mxu0 0.0
    %1902 = vmatpush1.msra.mxu0 %v1819
    %1903 = vmatprep.subr.mxu0 0.0
    %1904 = vmatpush1.msra.mxu0 %v1816
    %1905 = vmatprep.subr.mxu0 0.0
    %1906 = vmatpush1.msra.mxu0 %v1813
    %1907 = vmatprep.subr.mxu0 0.0
    %1908 = vmatpush1.msra.mxu0 %v1810
    %1909 = vmatprep.subr.mxu0 0.0
    %1910 = vmatpush1.msra.mxu0 %v1807
    %1911 = vmatprep.subr.mxu0 0.0
    %1912 = vmatpush1.msra.mxu0 %v1804
    %1913 = vmatprep.subr.mxu0 0.0
    %1914 = vmatpush1.msra.mxu0 %v1801
    %1915 = vmatprep.subr.mxu0 0.0
    %1916 = vmatpush1.msra.mxu0 %v1798
    %1917 = vmatprep.subr.mxu0 0.0
    %1918 = vmatpush1.msra.mxu0 %v1795
    %1919 = vmatprep.subr.mxu0 0.0
    %1920 = vmatpush1.msra.mxu0 %v1792
    %1921 = vmatprep.subr.mxu0 0.0
    %1922 = vmatpush1.msra.mxu0 %v1789
    %1923 = vmatprep.subr.mxu0 0.0
    %1924 = vmatpush1.msra.mxu0 %v1786
    %1925 = vmatprep.subr.mxu0 0.0
    %1926 = vmatpush1.msra.mxu0 %v1783
    %1927 = vmatprep.subr.mxu0 0.0
    %1928 = vmatpush1.msra.mxu0 %v1780
    %1929 = vmatprep.subr.mxu0 0.0
    %1930 = vmatpush2.msra.mxu0 0.0
    %1931 = vmatprep.subr.mxu0 0.0
    %1932 = vmatpush2.msra.mxu0 0.0
    %1933 = vmatprep.subr.mxu0 0.0
    %1934 = vmatpush2.msra.mxu0 0.0
    %1935 = vmatprep.subr.mxu0 0.0
    %1936 = vmatpush2.msra.mxu0 0.0
    %1937 = vmatprep.subr.mxu0 0.0
    %1938 = vmatpush2.msra.mxu0 0.0
    %1939 = vmatprep.subr.mxu0 0.0
    %1940 = vmatpush2.msra.mxu0 0.0
    %1941 = vmatprep.subr.mxu0 0.0
    %1942 = vmatpush2.msra.mxu0 0.0
    %1943 = vmatprep.subr.mxu0 0.0
    %1944 = vmatpush2.msra.mxu0 0.0
    %1945 = vmatprep.subr.mxu0 0.0
    %1946 = vmatpush2.msra.mxu0 0.0
    %1947 = vmatprep.subr.mxu0 0.0
    %1948 = vmatpush2.msra.mxu0 0.0
    %1949 = vmatprep.subr.mxu0 0.0
    %1950 = vmatpush2.msra.mxu0 0.0
    %1951 = vmatprep.subr.mxu0 0.0
    %1952 = vmatpush2.msra.mxu0 0.0
    %1953 = vmatprep.subr.mxu0 0.0
    %1954 = vmatpush2.msra.mxu0 0.0
    %1955 = vmatprep.subr.mxu0 0.0
    %1956 = vmatpush2.msra.mxu0 0.0
    %1957 = vmatprep.subr.mxu0 0.0
    %1958 = vmatpush2.msra.mxu0 0.0
    %1959 = vmatprep.subr.mxu0 0.0
    %1960 = vmatpush2.msra.mxu0 0.0
    %1961 = vmatprep.mubr.f32.mxu0 0.0
    %1962 = vmatmul.mubr.f32.gmra.mxu0 %v1775
    %v1963 = vpop.f32.mrf.mxu0
    %v1964 = vadd.f32 0.0, %v1963
    %v1965 = vpop.f32.mrf.mxu0
    %1966 = vdwg.mxu0
    %s1967 = scalar_lea.vmem [#allocation3], 36
    %v1968 = vld [vmem:[%s1967] sm:$0x3f]
    %v1971 = vcombine.low %v1893, %v1895
    %v1973 = vunpack.c.l.s4 1983009808
    %v1974 = vunpack.c.0.s8 %v1973
    %v1975 = vlaneseq
    %v1976 = vshrl.u32 %v1975, 7
    %v1977 = vsub.s32 %v1974, %v1976
    %v1978 = vrot.slane %v1971, %v1977
    %v1980 = vadd.f32 %v1968, %v1978
    %v1981 = vxor.u32 %v1980, 2147483648
    %v1982 = vmul.f32 %v1981, 1.442695
    %v1983 = vpow.pop %v1982
    %v1984 = vadd.f32 %v1983, 1.0
    %v1985 = vrcp.pop %v1984
    %v1986 = vmul.f32 1.0, %v1985
    %v1987 = vadd.f32 %v1964, %v642
    %v1988 = vmul.f32 %v1986, %v1987
    %v1990 = vrot.slane %v1968, 4
    %v1992 = vadd.f32 %v1990, %v1988
    %v1993 = vtanh.pop %v1992
    %v1994 = vsub.f32 %v1775, %v1993
    %v1996 = vrot.slane %v1986, 2
    %v1998 = vmul.f32 %v1996, %v1994
    %v1999 = vadd.f32 %v1993, %v1998
    %s2000 = scalar_lea.vmem [#allocation10], 12
    %2001 = vst [vmem:[%s2000] sm:$0x3] %v1999
    %v2002 = vld [vmem:[#allocation9] sm:$0xff]
    %v2003 = vld [vmem:[#allocation9 + $0x8] sm:$0xff]
    %v2004 = vld [vmem:[#allocation9 + $0x10] sm:$0xff]
    %v2005 = vld [vmem:[#allocation9 + $0x18] sm:$0xff]
    %v2006 = vld [vmem:[#allocation9 + $0x20] sm:$0xff]
    %v2007 = vld [vmem:[#allocation9 + $0x28] sm:$0xff]
    %v2008 = vld [vmem:[#allocation9 + $0x30] sm:$0xff]
    %v2009 = vld [vmem:[#allocation9 + $0x38] sm:$0xff]
    %v2010 = vld [vmem:[#allocation9 + $0x40] sm:$0xff]
    %v2011 = vld [vmem:[#allocation9 + $0x48] sm:$0xff]
    %v2012 = vld [vmem:[#allocation9 + $0x50] sm:$0xff]
    %v2013 = vld [vmem:[#allocation9 + $0x58] sm:$0xff]
    %v2014 = vld [vmem:[#allocation9 + $0x60] sm:$0xff]
    %v2015 = vld [vmem:[#allocation9 + $0x68] sm:$0xff]
    %v2016 = vld [vmem:[#allocation9 + $0x70] sm:$0xff]
    %v2017 = vld [vmem:[#allocation9 + $0x78] sm:$0xff]
    %v2018 = vld [vmem:[#allocation9 + $0x80] sm:$0xff]
    %v2019 = vld [vmem:[#allocation9 + $0x88] sm:$0xff]
    %v2020 = vld [vmem:[#allocation9 + $0x90] sm:$0xff]
    %v2021 = vld [vmem:[#allocation9 + $0x98] sm:$0xff]
    %v2022 = vld [vmem:[#allocation9 + $0xa0] sm:$0xff]
    %v2023 = vld [vmem:[#allocation9 + $0xa8] sm:$0xff]
    %v2024 = vld [vmem:[#allocation9 + $0xb0] sm:$0xff]
    %v2025 = vld [vmem:[#allocation9 + $0xb8] sm:$0xff]
    %v2026 = vld [vmem:[#allocation9 + $0xc0] sm:$0xff]
    %v2027 = vld [vmem:[#allocation9 + $0xc8] sm:$0xff]
    %v2028 = vld [vmem:[#allocation9 + $0xd0] sm:$0xff]
    %v2029 = vld [vmem:[#allocation9 + $0xd8] sm:$0xff]
    %v2030 = vld [vmem:[#allocation9 + $0xe0] sm:$0xff]
    %v2031 = vld [vmem:[#allocation9 + $0xe8] sm:$0xff]
    %v2032 = vld [vmem:[#allocation9 + $0xf0] sm:$0xff]
    %v2033 = vld [vmem:[#allocation9 + $0xf8] sm:$0xff]
    %v2034 = vld [vmem:[#allocation9 + $0x100] sm:$0xff]
    %v2035 = vld [vmem:[#allocation9 + $0x108] sm:$0xff]
    %v2036 = vld [vmem:[#allocation9 + $0x110] sm:$0xff]
    %v2037 = vld [vmem:[#allocation9 + $0x118] sm:$0xff]
    %v2038 = vld [vmem:[#allocation9 + $0x120] sm:$0xff]
    %v2039 = vld [vmem:[#allocation9 + $0x128] sm:$0xff]
    %v2040 = vld [vmem:[#allocation9 + $0x130] sm:$0xff]
    %v2041 = vld [vmem:[#allocation9 + $0x138] sm:$0xff]
    %v2042 = vld [vmem:[#allocation9 + $0x140] sm:$0xff]
    %v2043 = vld [vmem:[#allocation9 + $0x148] sm:$0xff]
    %v2044 = vld [vmem:[#allocation9 + $0x150] sm:$0xff]
    %v2045 = vld [vmem:[#allocation9 + $0x158] sm:$0xff]
    %v2046 = vld [vmem:[#allocation9 + $0x160] sm:$0xff]
    %v2047 = vld [vmem:[#allocation9 + $0x168] sm:$0xff]
    %v2048 = vld [vmem:[#allocation9 + $0x170] sm:$0xff]
    %v2049 = vld [vmem:[#allocation9 + $0x178] sm:$0xff]
    %2050 = vmatprep.subr.mxu0 %v2048
    %2051 = vmatpush1.msra.mxu0 %v2047
    %2052 = vmatprep.subr.mxu0 %v2045
    %2053 = vmatpush1.msra.mxu0 %v2044
    %2054 = vmatprep.subr.mxu0 %v2042
    %2055 = vmatpush1.msra.mxu0 %v2041
    %2056 = vmatprep.subr.mxu0 %v2039
    %2057 = vmatpush1.msra.mxu0 %v2038
    %2058 = vmatprep.subr.mxu0 %v2036
    %2059 = vmatpush1.msra.mxu0 %v2035
    %2060 = vmatprep.subr.mxu0 %v2033
    %2061 = vmatpush1.msra.mxu0 %v2032
    %2062 = vmatprep.subr.mxu0 %v2030
    %2063 = vmatpush1.msra.mxu0 %v2029
    %2064 = vmatprep.subr.mxu0 %v2027
    %2065 = vmatpush1.msra.mxu0 %v2026
    %2066 = vmatprep.subr.mxu0 %v2024
    %2067 = vmatpush1.msra.mxu0 %v2023
    %2068 = vmatprep.subr.mxu0 %v2021
    %2069 = vmatpush1.msra.mxu0 %v2020
    %2070 = vmatprep.subr.mxu0 %v2018
    %2071 = vmatpush1.msra.mxu0 %v2017
    %2072 = vmatprep.subr.mxu0 %v2015
    %2073 = vmatpush1.msra.mxu0 %v2014
    %2074 = vmatprep.subr.mxu0 %v2012
    %2075 = vmatpush1.msra.mxu0 %v2011
    %2076 = vmatprep.subr.mxu0 %v2009
    %2077 = vmatpush1.msra.mxu0 %v2008
    %2078 = vmatprep.subr.mxu0 %v2006
    %2079 = vmatpush1.msra.mxu0 %v2005
    %2080 = vmatprep.subr.mxu0 %v2003
    %2081 = vmatpush1.msra.mxu0 %v2002
    %2082 = vmatprep.subr.mxu0 0.0
    %2083 = vmatpush2.msra.mxu0 0.0
    %2084 = vmatprep.subr.mxu0 0.0
    %2085 = vmatpush2.msra.mxu0 0.0
    %2086 = vmatprep.subr.mxu0 0.0
    %2087 = vmatpush2.msra.mxu0 0.0
    %2088 = vmatprep.subr.mxu0 0.0
    %2089 = vmatpush2.msra.mxu0 0.0
    %2090 = vmatprep.subr.mxu0 0.0
    %2091 = vmatpush2.msra.mxu0 0.0
    %2092 = vmatprep.subr.mxu0 0.0
    %2093 = vmatpush2.msra.mxu0 0.0
    %2094 = vmatprep.subr.mxu0 0.0
    %2095 = vmatpush2.msra.mxu0 0.0
    %2096 = vmatprep.subr.mxu0 0.0
    %2097 = vmatpush2.msra.mxu0 0.0
    %2098 = vmatprep.subr.mxu0 0.0
    %2099 = vmatpush2.msra.mxu0 0.0
    %2100 = vmatprep.subr.mxu0 0.0
    %2101 = vmatpush2.msra.mxu0 0.0
    %2102 = vmatprep.subr.mxu0 0.0
    %2103 = vmatpush2.msra.mxu0 0.0
    %2104 = vmatprep.subr.mxu0 0.0
    %2105 = vmatpush2.msra.mxu0 0.0
    %2106 = vmatprep.subr.mxu0 0.0
    %2107 = vmatpush2.msra.mxu0 0.0
    %2108 = vmatprep.subr.mxu0 0.0
    %2109 = vmatpush2.msra.mxu0 0.0
    %2110 = vmatprep.subr.mxu0 0.0
    %2111 = vmatpush2.msra.mxu0 0.0
    %2112 = vmatprep.subr.mxu0 0.0
    %2113 = vmatpush2.msra.mxu0 0.0
    %2114 = vmatprep.mubr.f32.mxu0 0.0
    %2115 = vmatmul.mubr.f32.gmra.mxu0 %v1999
    %v2116 = vpop.f32.mrf.mxu0
    %v2117 = vadd.f32 0.0, %v2116
    %v2118 = vpop.f32.mrf.mxu0
    %v2119 = vadd.f32 0.0, %v2118
    %2120 = vdwg.mxu0
    %2121 = vmatprep.subr.mxu0 0.0
    %2122 = vmatpush1.msra.mxu0 %v2049
    %2123 = vmatprep.subr.mxu0 0.0
    %2124 = vmatpush1.msra.mxu0 %v2046
    %2125 = vmatprep.subr.mxu0 0.0
    %2126 = vmatpush1.msra.mxu0 %v2043
    %2127 = vmatprep.subr.mxu0 0.0
    %2128 = vmatpush1.msra.mxu0 %v2040
    %2129 = vmatprep.subr.mxu0 0.0
    %2130 = vmatpush1.msra.mxu0 %v2037
    %2131 = vmatprep.subr.mxu0 0.0
    %2132 = vmatpush1.msra.mxu0 %v2034
    %2133 = vmatprep.subr.mxu0 0.0
    %2134 = vmatpush1.msra.mxu0 %v2031
    %2135 = vmatprep.subr.mxu0 0.0
    %2136 = vmatpush1.msra.mxu0 %v2028
    %2137 = vmatprep.subr.mxu0 0.0
    %2138 = vmatpush1.msra.mxu0 %v2025
    %2139 = vmatprep.subr.mxu0 0.0
    %2140 = vmatpush1.msra.mxu0 %v2022
    %2141 = vmatprep.subr.mxu0 0.0
    %2142 = vmatpush1.msra.mxu0 %v2019
    %2143 = vmatprep.subr.mxu0 0.0
    %2144 = vmatpush1.msra.mxu0 %v2016
    %2145 = vmatprep.subr.mxu0 0.0
    %2146 = vmatpush1.msra.mxu0 %v2013
    %2147 = vmatprep.subr.mxu0 0.0
    %2148 = vmatpush1.msra.mxu0 %v2010
    %2149 = vmatprep.subr.mxu0 0.0
    %2150 = vmatpush1.msra.mxu0 %v2007
    %2151 = vmatprep.subr.mxu0 0.0
    %2152 = vmatpush1.msra.mxu0 %v2004
    %2153 = vmatprep.subr.mxu0 0.0
    %2154 = vmatpush2.msra.mxu0 0.0
    %2155 = vmatprep.subr.mxu0 0.0
    %2156 = vmatpush2.msra.mxu0 0.0
    %2157 = vmatprep.subr.mxu0 0.0
    %2158 = vmatpush2.msra.mxu0 0.0
    %2159 = vmatprep.subr.mxu0 0.0
    %2160 = vmatpush2.msra.mxu0 0.0
    %2161 = vmatprep.subr.mxu0 0.0
    %2162 = vmatpush2.msra.mxu0 0.0
    %2163 = vmatprep.subr.mxu0 0.0
    %2164 = vmatpush2.msra.mxu0 0.0
    %2165 = vmatprep.subr.mxu0 0.0
    %2166 = vmatpush2.msra.mxu0 0.0
    %2167 = vmatprep.subr.mxu0 0.0
    %2168 = vmatpush2.msra.mxu0 0.0
    %2169 = vmatprep.subr.mxu0 0.0
    %2170 = vmatpush2.msra.mxu0 0.0
    %2171 = vmatprep.subr.mxu0 0.0
    %2172 = vmatpush2.msra.mxu0 0.0
    %2173 = vmatprep.subr.mxu0 0.0
    %2174 = vmatpush2.msra.mxu0 0.0
    %2175 = vmatprep.subr.mxu0 0.0
    %2176 = vmatpush2.msra.mxu0 0.0
    %2177 = vmatprep.subr.mxu0 0.0
    %2178 = vmatpush2.msra.mxu0 0.0
    %2179 = vmatprep.subr.mxu0 0.0
    %2180 = vmatpush2.msra.mxu0 0.0
    %2181 = vmatprep.subr.mxu0 0.0
    %2182 = vmatpush2.msra.mxu0 0.0
    %2183 = vmatprep.subr.mxu0 0.0
    %2184 = vmatpush2.msra.mxu0 0.0
    %2185 = vmatprep.mubr.f32.mxu0 0.0
    %2186 = vmatmul.mubr.f32.gmra.mxu0 %v1999
    %v2187 = vpop.f32.mrf.mxu0
    %v2188 = vadd.f32 0.0, %v2187
    %v2189 = vpop.f32.mrf.mxu0
    %2190 = vdwg.mxu0
    %s2191 = scalar_lea.vmem [#allocation3], 42
    %v2192 = vld [vmem:[%s2191] sm:$0x3f]
    %v2195 = vcombine.low %v2117, %v2119
    %v2197 = vunpack.c.l.s4 1983009808
    %v2198 = vunpack.c.0.s8 %v2197
    %v2199 = vlaneseq
    %v2200 = vshrl.u32 %v2199, 7
    %v2201 = vsub.s32 %v2198, %v2200
    %v2202 = vrot.slane %v2195, %v2201
    %v2204 = vadd.f32 %v2192, %v2202
    %v2205 = vxor.u32 %v2204, 2147483648
    %v2206 = vmul.f32 %v2205, 1.442695
    %v2207 = vpow.pop %v2206
    %v2208 = vadd.f32 %v2207, 1.0
    %v2209 = vrcp.pop %v2208
    %v2210 = vmul.f32 1.0, %v2209
    %v2211 = vadd.f32 %v2188, %v642
    %v2212 = vmul.f32 %v2210, %v2211
    %v2214 = vrot.slane %v2192, 4
    %v2216 = vadd.f32 %v2214, %v2212
    %v2217 = vtanh.pop %v2216
    %v2218 = vsub.f32 %v1999, %v2217
    %v2220 = vrot.slane %v2210, 2
    %v2222 = vmul.f32 %v2220, %v2218
    %v2223 = vadd.f32 %v2217, %v2222
    %s2224 = scalar_lea.vmem [#allocation10], 14
    %2225 = vst [vmem:[%s2224] sm:$0x3] %v2223
    %2226 = vst [vmem:[#allocation2] sm:$0x3] %v2223
    // Predicated region
    $region38: #{tpu_custom_call.1} parent=1 // pred_check
      _
    $region39: #{tpu_custom_call.1} parent=1 // pred_check_branch
      %2228 = sbr.rel (0) target = $region41
    $region40: #{tpu_custom_call.1} parent=1 // pred_region
      %s2230 = ssub.s32 256, 256
      %2231 = vsyncadd [#allocation6], %s2230
      %s2232 = sshll.u32 [#allocation10], 4
      %s2233 = int_to_ptr.vmem [resolvable:$true] %s2232
      %2238 = dma.vmem_to_hbm [thread:$0]  %s2233, 256, %s5, [#allocation6], 32, 32, 2
    $region41: #{tpu_custom_call.1} parent=1 // pred_fallthru
      _
    // Predicated region
    $region42: #{tpu_custom_call.1} parent=1 // pred_check
      _
    $region43: #{tpu_custom_call.1} parent=1 // pred_check_branch
      %2240 = sbr.rel (0) target = $region45
    $region44: #{tpu_custom_call.1} parent=1 // pred_region
      %2241 = dma.done [#allocation6], 256
    $region45: #{tpu_custom_call.1} parent=1 // pred_fallthru
      _
    %2242 = vsyncpa [#allocation5], 1
    %2243 = vsyncpa [#allocation8], 1
    %2244 = vsyncpa [#allocation6], 1

</llo_original>
